<compile_context>
chip_gen: v6e
topology: v6e:2x2x1
jax: 0.10.0
libtpu: 0.0.40
codegen_flags: <defaults>
</compile_context>

<pallas_src>
import jax
import jax.numpy as jnp
from jax.experimental import pallas as pl
from jax.experimental.pallas import tpu as pltpu


def asfrnn_kernel(xproj_ref, whh_ref, m_ref, dfb_ref, alpha_ref, alphas_ref,
                  rnn_out_ref,
                  h_sc, s_sc, ring_sc):
    chunk = pl.program_id(0)
    T = rnn_out_ref.shape[0]
    delay = ring_sc.shape[0]

    @pl.when(chunk == 0)
    def _():
        h_sc[...] = jnp.zeros_like(h_sc)
        s_sc[...] = jnp.zeros_like(s_sc)
        ring_sc[...] = jnp.zeros_like(ring_sc)

    # Hoist all weight/param loads out of the timestep loop.
    whh = whh_ref[...]          # (H, H)  h2h weight, pre-transposed
    m = m_ref[...]              # (H, H)  fused Wfc^T @ A^T (fc -> f2h)
    dfb = dfb_ref[...]          # (1, H)  b_fc @ A^T (only when feedback active)
    alpha = alpha_ref[...]      # (1, H)
    alpha_s = alphas_ref[...]   # (1, H)
    zero_b = jnp.zeros_like(dfb)

    def step(t, carry):
        h, s = carry
        i = chunk * T + t                      # global timestep
        idx = i % delay                        # ring slot holding h_{i-delay}

        # ring_sc holds zeros for i < delay (zero-init at chunk 0), so the
        # matmul contribution is naturally 0 there; only gate the fc bias.
        h_d = ring_sc[idx]                     # (B, H) = h_{i-delay}
        fb_bias = jnp.where(i >= delay, dfb, zero_b)

        # Delayed feedback path: f2h(fc(h_{i-delay})) fused into one matmul.
        fb = jnp.dot(h_d, m, preferred_element_type=jnp.float32) + fb_bias
        # Recurrent path (biases b_in + b_h2h + b_f2h already folded into xproj).
        hh = jnp.dot(h, whh, preferred_element_type=jnp.float32)
        pre = xproj_ref[t] + hh + fb

        s_new = alpha_s * (pre - s) + s
        h_new = alpha * (jnp.tanh(s_new) - h) + h

        ring_sc[idx] = h_new
        rnn_out_ref[t] = h_new
        return (h_new, s_new)

    hT, sT = jax.lax.fori_loop(0, T, step, (h_sc[...], s_sc[...]), unroll=True)
    # Persist carried state across time chunks.
    h_sc[...] = hT
    s_sc[...] = sT


def asfrnn_forward(x, params, feedback_delay, time_chunk=None):
    """x: (S, B, I) float32. Returns (out (S,B,O), rnn_out (S,B,H))."""
    S, B, I = x.shape
    H = params["w_h2h"].shape[0]
    O = params["w_fc"].shape[0]
    assert feedback_delay >= 1

    T = S if time_chunk is None else time_chunk
    assert S % T == 0
    num_chunks = S // T

    # --- Hoisted, time-independent precompute (one MXU-friendly matmul) ---
    # Fold all constant biases in:  b_in + b_h2h + b_f2h
    # (f2h(0) = b_f2h when feedback is off; when on, the extra b_fc@A^T term is
    #  added inside the kernel, gated by i >= delay).
    bias_all = (params["b_in"] + params["b_h2h"] + params["b_f2h"]).reshape(1, H)
    xproj = ((x.reshape(S * B, I) @ params["w_in"].T).reshape(S, B, H)
             + bias_all).astype(jnp.float32)

    whh_t = params["w_h2h"].T                               # (H, H)
    # Fused feedback operator: f2h(fc(h)) = h @ (Wfc^T A^T) + b_fc A^T + b_f2h
    m = params["w_fc"].T @ params["w_f2h"].T                # (H, H)
    dfb = (params["b_fc"] @ params["w_f2h"].T).reshape(1, H)
    alpha = params["alpha"].reshape(1, H).astype(jnp.float32)
    alpha_s = params["alpha_s"].reshape(1, H).astype(jnp.float32)

    full = lambda shape: pl.BlockSpec(shape, lambda c: tuple(0 for _ in shape))

    rnn_out = pl.pallas_call(
        asfrnn_kernel,
        out_shape=jax.ShapeDtypeStruct((S, B, H), jnp.float32),
        grid=(num_chunks,),
        in_specs=[
            pl.BlockSpec((T, B, H), lambda c: (c, 0, 0)),   # xproj chunk
            full((H, H)),                                   # whh_t
            full((H, H)),                                   # m (fused fc->f2h)
            full((1, H)),                                   # dfb
            full((1, H)),                                   # alpha
            full((1, H)),                                   # alpha_s
        ],
        out_specs=pl.BlockSpec((T, B, H), lambda c: (c, 0, 0)),
        scratch_shapes=[
            pltpu.VMEM((B, H), jnp.float32),                  # h carry
            pltpu.VMEM((B, H), jnp.float32),                  # s carry
            pltpu.VMEM((feedback_delay, B, H), jnp.float32),  # hidden ring buffer
        ],
        compiler_params=pltpu.CompilerParams(
            dimension_semantics=("arbitrary",)),              # recurrent over time
    )(xproj, whh_t, m, dfb, alpha, alpha_s)

    # --- Hoisted FC head: one big matmul over all timesteps ---
    out = (rnn_out.reshape(S * B, H) @ params["w_fc"].T
           + params["b_fc"]).reshape(S, B, O)
    return out, rnn_out


def asfrnn_reference(x, params, feedback_delay):
    """Pure-JAX reference matching the PyTorch forward loop."""
    S, B, _ = x.shape
    H = params["w_h2h"].shape[0]
    O = params["w_fc"].shape[0]
    h = jnp.zeros((B, H), jnp.float32)
    s = jnp.zeros((B, H), jnp.float32)
    fb0 = jnp.zeros((B, O), jnp.float32)
    outs, hs = [], []
    for i in range(S):
        fb = fb0 if i < feedback_delay else outs[i - feedback_delay]
        pre = (x[i] @ params["w_in"].T + params["b_in"]
               + h @ params["w_h2h"].T + params["b_h2h"]
               + fb @ params["w_f2h"].T + params["b_f2h"])
        s = params["alpha_s"] * (pre - s) + s
        h = params["alpha"] * (jnp.tanh(s) - h) + h
        hs.append(h)
        outs.append(h @ params["w_fc"].T + params["b_fc"])
    return jnp.stack(outs, 0), jnp.stack(hs, 0)


def init_params(key, input_size, hidden_size, output_size,
                unique_alphas=(0.2, 0.5)):
    """Deterministic init following PyTorch nn.Linear shapes/conventions."""
    H, I, O = hidden_size, input_size, output_size
    ks = jax.random.split(key, 9)

    def linear(kw, kb, fan_in, shape_w):
        bound = 1.0 / float(jnp.sqrt(jnp.float32(fan_in)))
        w = jax.random.uniform(kw, shape_w, jnp.float32, -bound, bound)
        b = jax.random.uniform(kb, (shape_w[0],), jnp.float32, -bound, bound)
        return w, b

    w_in, b_in = linear(ks[0], ks[1], I, (H, I))       # input2h
    w_h2h, b_h2h = linear(ks[2], ks[3], H, (H, H))     # h2h
    w_f2h, b_f2h = linear(ks[4], ks[5], O, (H, O))     # f2h
    w_fc, b_fc = linear(ks[6], ks[7], H, (O, H))       # fc

    ua = jnp.asarray(unique_alphas, jnp.float32)
    idx = jax.random.randint(ks[8], (1, H), 0, ua.shape[0])
    alpha = ua[idx]                                     # (1, H)
    alpha_s = alpha                                     # detached clone

    return dict(w_in=w_in, b_in=b_in, w_h2h=w_h2h, b_h2h=b_h2h,
                w_f2h=w_f2h, b_f2h=b_f2h, w_fc=w_fc, b_fc=b_fc,
                alpha=alpha, alpha_s=alpha_s)


if __name__ == "__main__":
    FS = 80                                   # TODO(synk): FS undefined in source
    feedback_delay = int(50 * FS / 1000)      # = 4

    key = jax.random.PRNGKey(0)
    seq_len, batch, input_size, hidden_size, output_size = 8, 2, 16, 32, 8

    k_x, k_p = jax.random.split(key)
    x = jax.random.normal(k_x, (seq_len, batch, input_size), jnp.float32)
    params = init_params(k_p, input_size, hidden_size, output_size)

    out, rnn_out = asfrnn_forward(x, params, feedback_delay)
    jax.block_until_ready((out, rnn_out))

    assert out.shape == (seq_len, batch, output_size)
    assert rnn_out.shape == (seq_len, batch, hidden_size)

    # Sanity check against the pure-JAX reference (loose tol: f32 MXU rounding).
    out_ref, rnn_ref = asfrnn_reference(x, params, feedback_delay)
    assert jnp.allclose(out, out_ref, atol=1e-2, rtol=1e-2)
    assert jnp.allclose(rnn_out, rnn_ref, atol=1e-2, rtol=1e-2)

    print("KERNEL_OK")
</pallas_src>

<mosaic_0001>
module attributes {stable_mosaic.version = 11 : i64} {
  func.func @asfrnn_kernel(%arg0: i32, %arg1: memref<8x2x32xf32, #tpu.memory_space<vmem>>, %arg2: memref<32x32xf32, #tpu.memory_space<vmem>>, %arg3: memref<32x32xf32, #tpu.memory_space<vmem>>, %arg4: memref<1x32xf32, #tpu.memory_space<vmem>>, %arg5: memref<1x32xf32, #tpu.memory_space<vmem>>, %arg6: memref<1x32xf32, #tpu.memory_space<vmem>>, %arg7: memref<8x2x32xf32, #tpu.memory_space<vmem>>, %arg8: memref<2x32xf32, #tpu.memory_space<vmem>>, %arg9: memref<2x32xf32, #tpu.memory_space<vmem>>, %arg10: memref<4x2x32xf32, #tpu.memory_space<vmem>>) attributes {dimension_semantics = [#tpu.dimension_semantics<arbitrary>], iteration_bounds = array<i64: 1>, scalar_prefetch = 0 : i64, scratch_operands = 3 : i64, tpu.core_type = #tpu.core_type<tc>, window_params = [{transform_indices = @transform_0, window_bounds = array<i64: 8, 2, 32>}, {pipeline_mode = #tpu.pipeline_mode<synchronous>, transform_indices = @transform_1, window_bounds = array<i64: 32, 32>}, {pipeline_mode = #tpu.pipeline_mode<synchronous>, transform_indices = @transform_2, window_bounds = array<i64: 32, 32>}, {pipeline_mode = #tpu.pipeline_mode<synchronous>, transform_indices = @transform_3, window_bounds = array<i64: 1, 32>}, {pipeline_mode = #tpu.pipeline_mode<synchronous>, transform_indices = @transform_4, window_bounds = array<i64: 1, 32>}, {pipeline_mode = #tpu.pipeline_mode<synchronous>, transform_indices = @transform_5, window_bounds = array<i64: 1, 32>}, {transform_indices = @transform_6, window_bounds = array<i64: 8, 2, 32>}]} {
    %c0_i32 = arith.constant 0 : i32
    %0 = arith.cmpi eq, %arg0, %c0_i32 : i32
    %1 = arith.extui %0 : i1 to i32
    %c0_i32_0 = arith.constant 0 : i32
    %2 = arith.cmpi ne, %1, %c0_i32_0 : i32
    scf.if %2 {
      %cst_163 = arith.constant 0.000000e+00 : f32
      %357 = vector.broadcast %cst_163 : f32 to vector<2x32xf32>
      %c0_164 = arith.constant 0 : index
      %c0_165 = arith.constant 0 : index
      %358 = vector.load %arg8[%c0_164, %c0_165] : memref<2x32xf32, #tpu.memory_space<vmem>>, vector<2x32xf32>
      tpu.vector_store %arg8[%c0_164, %c0_165], %357 {strides = array<i32>} : memref<2x32xf32, #tpu.memory_space<vmem>>, vector<2x32xf32>,
      %cst_166 = arith.constant 0.000000e+00 : f32
      %359 = vector.broadcast %cst_166 : f32 to vector<2x32xf32>
      %c0_167 = arith.constant 0 : index
      %c0_168 = arith.constant 0 : index
      %360 = vector.load %arg9[%c0_167, %c0_168] : memref<2x32xf32, #tpu.memory_space<vmem>>, vector<2x32xf32>
      tpu.vector_store %arg9[%c0_167, %c0_168], %359 {strides = array<i32>} : memref<2x32xf32, #tpu.memory_space<vmem>>, vector<2x32xf32>,
      %cst_169 = arith.constant 0.000000e+00 : f32
      %361 = vector.broadcast %cst_169 : f32 to vector<4x2x32xf32>
      %c0_170 = arith.constant 0 : index
      %c0_171 = arith.constant 0 : index
      %c0_172 = arith.constant 0 : index
      %362 = vector.load %arg10[%c0_170, %c0_171, %c0_172] : memref<4x2x32xf32, #tpu.memory_space<vmem>>, vector<4x2x32xf32>
      tpu.vector_store %arg10[%c0_170, %c0_171, %c0_172], %361 {strides = array<i32>} : memref<4x2x32xf32, #tpu.memory_space<vmem>>, vector<4x2x32xf32>,
    } else {
    }
    %c0 = arith.constant 0 : index
    %c0_1 = arith.constant 0 : index
    %3 = vector.load %arg2[%c0, %c0_1] : memref<32x32xf32, #tpu.memory_space<vmem>>, vector<32x32xf32>
    %c0_2 = arith.constant 0 : index
    %c0_3 = arith.constant 0 : index
    %4 = vector.load %arg3[%c0_2, %c0_3] : memref<32x32xf32, #tpu.memory_space<vmem>>, vector<32x32xf32>
    %c0_4 = arith.constant 0 : index
    %c0_5 = arith.constant 0 : index
    %5 = vector.load %arg4[%c0_4, %c0_5] : memref<1x32xf32, #tpu.memory_space<vmem>>, vector<1x32xf32>
    %c0_6 = arith.constant 0 : index
    %c0_7 = arith.constant 0 : index
    %6 = vector.load %arg5[%c0_6, %c0_7] : memref<1x32xf32, #tpu.memory_space<vmem>>, vector<1x32xf32>
    %c0_8 = arith.constant 0 : index
    %c0_9 = arith.constant 0 : index
    %7 = vector.load %arg6[%c0_8, %c0_9] : memref<1x32xf32, #tpu.memory_space<vmem>>, vector<1x32xf32>
    %cst = arith.constant 0.000000e+00 : f32
    %8 = vector.broadcast %cst : f32 to vector<1x32xf32>
    %c0_10 = arith.constant 0 : index
    %c0_11 = arith.constant 0 : index
    %9 = vector.load %arg8[%c0_10, %c0_11] : memref<2x32xf32, #tpu.memory_space<vmem>>, vector<2x32xf32>
    %c0_12 = arith.constant 0 : index
    %c0_13 = arith.constant 0 : index
    %10 = vector.load %arg9[%c0_12, %c0_13] : memref<2x32xf32, #tpu.memory_space<vmem>>, vector<2x32xf32>
    %c0_i32_14 = arith.constant 0 : i32
    %c8_i32 = arith.constant 8 : i32
    %11 = arith.muli %arg0, %c8_i32 : i32
    %12 = arith.addi %11, %c0_i32_14 : i32
    %c4_i32 = arith.constant 4 : i32
    %c0_i32_15 = arith.constant 0 : i32
    %13 = arith.cmpi eq, %c4_i32, %c0_i32_15 : i32
    %c1_i32 = arith.constant 1 : i32
    %14 = arith.select %13, %c1_i32, %c4_i32 : i32
    %15 = arith.remsi %12, %14 : i32
    %c0_i32_16 = arith.constant 0 : i32
    %16 = arith.cmpi ne, %15, %c0_i32_16 : i32
    %c0_i32_17 = arith.constant 0 : i32
    %17 = arith.cmpi slt, %15, %c0_i32_17 : i32
    %c0_i32_18 = arith.constant 0 : i32
    %18 = arith.cmpi slt, %14, %c0_i32_18 : i32
    %19 = arith.xori %17, %18 : i1
    %20 = arith.andi %19, %16 : i1
    %21 = arith.addi %15, %14 : i32
    %22 = arith.select %20, %21, %15 : i32
    %23 = arith.index_cast %22 : i32 to index
    %c0_19 = arith.constant 0 : index
    %c0_20 = arith.constant 0 : index
    %24 = vector.load %arg10[%23, %c0_19, %c0_20] : memref<4x2x32xf32, #tpu.memory_space<vmem>>, vector<1x2x32xf32>
    %25 = vector.shape_cast %24 : vector<1x2x32xf32> to vector<2x32xf32>
    %c4_i32_21 = arith.constant 4 : i32
    %26 = arith.cmpi sge, %12, %c4_i32_21 : i32
    %27 = arith.select %26, %5, %8 : vector<1x32xf32>
    %cst_22 = arith.constant dense<0.000000e+00> : vector<2x32xf32>
    %28 = tpu.matmul %25, %4, %cst_22 {dimension_numbers = #tpu.dot_dimension_numbers<[1], [0], [0], [1], [0, 0, 1, 1], [], []>} : vector<2x32xf32>, vector<32x32xf32>, vector<2x32xf32> -> vector<2x32xf32>
    %29 = vector.broadcast %27 : vector<1x32xf32> to vector<2x32xf32>
    %30 = arith.addf %28, %29 : vector<2x32xf32>
    %cst_23 = arith.constant dense<0.000000e+00> : vector<2x32xf32>
    %31 = tpu.matmul %9, %3, %cst_23 {dimension_numbers = #tpu.dot_dimension_numbers<[1], [0], [0], [1], [0, 0, 1, 1], [], []>} : vector<2x32xf32>, vector<32x32xf32>, vector<2x32xf32> -> vector<2x32xf32>
    %32 = arith.index_cast %c0_i32_14 : i32 to index
    %c0_24 = arith.constant 0 : index
    %c0_25 = arith.constant 0 : index
    %33 = vector.load %arg1[%32, %c0_24, %c0_25] : memref<8x2x32xf32, #tpu.memory_space<vmem>>, vector<1x2x32xf32>
    %34 = vector.shape_cast %33 : vector<1x2x32xf32> to vector<2x32xf32>
    %35 = arith.addf %34, %31 : vector<2x32xf32>
    %36 = arith.addf %35, %30 : vector<2x32xf32>
    %37 = arith.subf %36, %10 : vector<2x32xf32>
    %38 = vector.broadcast %7 : vector<1x32xf32> to vector<2x32xf32>
    %39 = arith.mulf %38, %37 : vector<2x32xf32>
    %40 = arith.addf %39, %10 : vector<2x32xf32>
    %41 = math.tanh %40 : vector<2x32xf32>
    %42 = arith.subf %41, %9 : vector<2x32xf32>
    %43 = vector.broadcast %6 : vector<1x32xf32> to vector<2x32xf32>
    %44 = arith.mulf %43, %42 : vector<2x32xf32>
    %45 = arith.addf %44, %9 : vector<2x32xf32>
    %46 = arith.index_cast %22 : i32 to index
    %c0_26 = arith.constant 0 : index
    %c0_27 = arith.constant 0 : index
    %47 = vector.load %arg10[%46, %c0_26, %c0_27] : memref<4x2x32xf32, #tpu.memory_space<vmem>>, vector<1x2x32xf32>
    %48 = vector.shape_cast %47 : vector<1x2x32xf32> to vector<2x32xf32>
    %49 = vector.shape_cast %45 : vector<2x32xf32> to vector<1x2x32xf32>
    tpu.vector_store %arg10[%46, %c0_26, %c0_27], %49 {strides = array<i32>} : memref<4x2x32xf32, #tpu.memory_space<vmem>>, vector<1x2x32xf32>,
    %50 = arith.index_cast %c0_i32_14 : i32 to index
    %c0_28 = arith.constant 0 : index
    %c0_29 = arith.constant 0 : index
    %51 = vector.load %arg7[%50, %c0_28, %c0_29] : memref<8x2x32xf32, #tpu.memory_space<vmem>>, vector<1x2x32xf32>
    %52 = vector.shape_cast %51 : vector<1x2x32xf32> to vector<2x32xf32>
    %53 = vector.shape_cast %45 : vector<2x32xf32> to vector<1x2x32xf32>
    tpu.vector_store %arg7[%50, %c0_28, %c0_29], %53 {strides = array<i32>} : memref<8x2x32xf32, #tpu.memory_space<vmem>>, vector<1x2x32xf32>,
    %c1_i32_30 = arith.constant 1 : i32
    %c8_i32_31 = arith.constant 8 : i32
    %54 = arith.muli %arg0, %c8_i32_31 : i32
    %55 = arith.addi %54, %c1_i32_30 : i32
    %c4_i32_32 = arith.constant 4 : i32
    %c0_i32_33 = arith.constant 0 : i32
    %56 = arith.cmpi eq, %c4_i32_32, %c0_i32_33 : i32
    %c1_i32_34 = arith.constant 1 : i32
    %57 = arith.select %56, %c1_i32_34, %c4_i32_32 : i32
    %58 = arith.remsi %55, %57 : i32
    %c0_i32_35 = arith.constant 0 : i32
    %59 = arith.cmpi ne, %58, %c0_i32_35 : i32
    %c0_i32_36 = arith.constant 0 : i32
    %60 = arith.cmpi slt, %58, %c0_i32_36 : i32
    %c0_i32_37 = arith.constant 0 : i32
    %61 = arith.cmpi slt, %57, %c0_i32_37 : i32
    %62 = arith.xori %60, %61 : i1
    %63 = arith.andi %62, %59 : i1
    %64 = arith.addi %58, %57 : i32
    %65 = arith.select %63, %64, %58 : i32
    %66 = arith.index_cast %65 : i32 to index
    %c0_38 = arith.constant 0 : index
    %c0_39 = arith.constant 0 : index
    %67 = vector.load %arg10[%66, %c0_38, %c0_39] : memref<4x2x32xf32, #tpu.memory_space<vmem>>, vector<1x2x32xf32>
    %68 = vector.shape_cast %67 : vector<1x2x32xf32> to vector<2x32xf32>
    %c4_i32_40 = arith.constant 4 : i32
    %69 = arith.cmpi sge, %55, %c4_i32_40 : i32
    %70 = arith.select %69, %5, %8 : vector<1x32xf32>
    %cst_41 = arith.constant dense<0.000000e+00> : vector<2x32xf32>
    %71 = tpu.matmul %68, %4, %cst_41 {dimension_numbers = #tpu.dot_dimension_numbers<[1], [0], [0], [1], [0, 0, 1, 1], [], []>} : vector<2x32xf32>, vector<32x32xf32>, vector<2x32xf32> -> vector<2x32xf32>
    %72 = vector.broadcast %70 : vector<1x32xf32> to vector<2x32xf32>
    %73 = arith.addf %71, %72 : vector<2x32xf32>
    %cst_42 = arith.constant dense<0.000000e+00> : vector<2x32xf32>
    %74 = tpu.matmul %45, %3, %cst_42 {dimension_numbers = #tpu.dot_dimension_numbers<[1], [0], [0], [1], [0, 0, 1, 1], [], []>} : vector<2x32xf32>, vector<32x32xf32>, vector<2x32xf32> -> vector<2x32xf32>
    %75 = arith.index_cast %c1_i32_30 : i32 to index
    %c0_43 = arith.constant 0 : index
    %c0_44 = arith.constant 0 : index
    %76 = vector.load %arg1[%75, %c0_43, %c0_44] : memref<8x2x32xf32, #tpu.memory_space<vmem>>, vector<1x2x32xf32>
    %77 = vector.shape_cast %76 : vector<1x2x32xf32> to vector<2x32xf32>
    %78 = arith.addf %77, %74 : vector<2x32xf32>
    %79 = arith.addf %78, %73 : vector<2x32xf32>
    %80 = arith.subf %79, %40 : vector<2x32xf32>
    %81 = vector.broadcast %7 : vector<1x32xf32> to vector<2x32xf32>
    %82 = arith.mulf %81, %80 : vector<2x32xf32>
    %83 = arith.addf %82, %40 : vector<2x32xf32>
    %84 = math.tanh %83 : vector<2x32xf32>
    %85 = arith.subf %84, %45 : vector<2x32xf32>
    %86 = vector.broadcast %6 : vector<1x32xf32> to vector<2x32xf32>
    %87 = arith.mulf %86, %85 : vector<2x32xf32>
    %88 = arith.addf %87, %45 : vector<2x32xf32>
    %89 = arith.index_cast %65 : i32 to index
    %c0_45 = arith.constant 0 : index
    %c0_46 = arith.constant 0 : index
    %90 = vector.load %arg10[%89, %c0_45, %c0_46] : memref<4x2x32xf32, #tpu.memory_space<vmem>>, vector<1x2x32xf32>
    %91 = vector.shape_cast %90 : vector<1x2x32xf32> to vector<2x32xf32>
    %92 = vector.shape_cast %88 : vector<2x32xf32> to vector<1x2x32xf32>
    tpu.vector_store %arg10[%89, %c0_45, %c0_46], %92 {strides = array<i32>} : memref<4x2x32xf32, #tpu.memory_space<vmem>>, vector<1x2x32xf32>,
    %93 = arith.index_cast %c1_i32_30 : i32 to index
    %c0_47 = arith.constant 0 : index
    %c0_48 = arith.constant 0 : index
    %94 = vector.load %arg7[%93, %c0_47, %c0_48] : memref<8x2x32xf32, #tpu.memory_space<vmem>>, vector<1x2x32xf32>
    %95 = vector.shape_cast %94 : vector<1x2x32xf32> to vector<2x32xf32>
    %96 = vector.shape_cast %88 : vector<2x32xf32> to vector<1x2x32xf32>
    tpu.vector_store %arg7[%93, %c0_47, %c0_48], %96 {strides = array<i32>} : memref<8x2x32xf32, #tpu.memory_space<vmem>>, vector<1x2x32xf32>,
    %c2_i32 = arith.constant 2 : i32
    %c8_i32_49 = arith.constant 8 : i32
    %97 = arith.muli %arg0, %c8_i32_49 : i32
    %98 = arith.addi %97, %c2_i32 : i32
    %c4_i32_50 = arith.constant 4 : i32
    %c0_i32_51 = arith.constant 0 : i32
    %99 = arith.cmpi eq, %c4_i32_50, %c0_i32_51 : i32
    %c1_i32_52 = arith.constant 1 : i32
    %100 = arith.select %99, %c1_i32_52, %c4_i32_50 : i32
    %101 = arith.remsi %98, %100 : i32
    %c0_i32_53 = arith.constant 0 : i32
    %102 = arith.cmpi ne, %101, %c0_i32_53 : i32
    %c0_i32_54 = arith.constant 0 : i32
    %103 = arith.cmpi slt, %101, %c0_i32_54 : i32
    %c0_i32_55 = arith.constant 0 : i32
    %104 = arith.cmpi slt, %100, %c0_i32_55 : i32
    %105 = arith.xori %103, %104 : i1
    %106 = arith.andi %105, %102 : i1
    %107 = arith.addi %101, %100 : i32
    %108 = arith.select %106, %107, %101 : i32
    %109 = arith.index_cast %108 : i32 to index
    %c0_56 = arith.constant 0 : index
    %c0_57 = arith.constant 0 : index
    %110 = vector.load %arg10[%109, %c0_56, %c0_57] : memref<4x2x32xf32, #tpu.memory_space<vmem>>, vector<1x2x32xf32>
    %111 = vector.shape_cast %110 : vector<1x2x32xf32> to vector<2x32xf32>
    %c4_i32_58 = arith.constant 4 : i32
    %112 = arith.cmpi sge, %98, %c4_i32_58 : i32
    %113 = arith.select %112, %5, %8 : vector<1x32xf32>
    %cst_59 = arith.constant dense<0.000000e+00> : vector<2x32xf32>
    %114 = tpu.matmul %111, %4, %cst_59 {dimension_numbers = #tpu.dot_dimension_numbers<[1], [0], [0], [1], [0, 0, 1, 1], [], []>} : vector<2x32xf32>, vector<32x32xf32>, vector<2x32xf32> -> vector<2x32xf32>
    %115 = vector.broadcast %113 : vector<1x32xf32> to vector<2x32xf32>
    %116 = arith.addf %114, %115 : vector<2x32xf32>
    %cst_60 = arith.constant dense<0.000000e+00> : vector<2x32xf32>
    %117 = tpu.matmul %88, %3, %cst_60 {dimension_numbers = #tpu.dot_dimension_numbers<[1], [0], [0], [1], [0, 0, 1, 1], [], []>} : vector<2x32xf32>, vector<32x32xf32>, vector<2x32xf32> -> vector<2x32xf32>
    %118 = arith.index_cast %c2_i32 : i32 to index
    %c0_61 = arith.constant 0 : index
    %c0_62 = arith.constant 0 : index
    %119 = vector.load %arg1[%118, %c0_61, %c0_62] : memref<8x2x32xf32, #tpu.memory_space<vmem>>, vector<1x2x32xf32>
    %120 = vector.shape_cast %119 : vector<1x2x32xf32> to vector<2x32xf32>
    %121 = arith.addf %120, %117 : vector<2x32xf32>
    %122 = arith.addf %121, %116 : vector<2x32xf32>
    %123 = arith.subf %122, %83 : vector<2x32xf32>
    %124 = vector.broadcast %7 : vector<1x32xf32> to vector<2x32xf32>
    %125 = arith.mulf %124, %123 : vector<2x32xf32>
    %126 = arith.addf %125, %83 : vector<2x32xf32>
    %127 = math.tanh %126 : vector<2x32xf32>
    %128 = arith.subf %127, %88 : vector<2x32xf32>
    %129 = vector.broadcast %6 : vector<1x32xf32> to vector<2x32xf32>
    %130 = arith.mulf %129, %128 : vector<2x32xf32>
    %131 = arith.addf %130, %88 : vector<2x32xf32>
    %132 = arith.index_cast %108 : i32 to index
    %c0_63 = arith.constant 0 : index
    %c0_64 = arith.constant 0 : index
    %133 = vector.load %arg10[%132, %c0_63, %c0_64] : memref<4x2x32xf32, #tpu.memory_space<vmem>>, vector<1x2x32xf32>
    %134 = vector.shape_cast %133 : vector<1x2x32xf32> to vector<2x32xf32>
    %135 = vector.shape_cast %131 : vector<2x32xf32> to vector<1x2x32xf32>
    tpu.vector_store %arg10[%132, %c0_63, %c0_64], %135 {strides = array<i32>} : memref<4x2x32xf32, #tpu.memory_space<vmem>>, vector<1x2x32xf32>,
    %136 = arith.index_cast %c2_i32 : i32 to index
    %c0_65 = arith.constant 0 : index
    %c0_66 = arith.constant 0 : index
    %137 = vector.load %arg7[%136, %c0_65, %c0_66] : memref<8x2x32xf32, #tpu.memory_space<vmem>>, vector<1x2x32xf32>
    %138 = vector.shape_cast %137 : vector<1x2x32xf32> to vector<2x32xf32>
    %139 = vector.shape_cast %131 : vector<2x32xf32> to vector<1x2x32xf32>
    tpu.vector_store %arg7[%136, %c0_65, %c0_66], %139 {strides = array<i32>} : memref<8x2x32xf32, #tpu.memory_space<vmem>>, vector<1x2x32xf32>,
    %c3_i32 = arith.constant 3 : i32
    %c8_i32_67 = arith.constant 8 : i32
    %140 = arith.muli %arg0, %c8_i32_67 : i32
    %141 = arith.addi %140, %c3_i32 : i32
    %c4_i32_68 = arith.constant 4 : i32
    %c0_i32_69 = arith.constant 0 : i32
    %142 = arith.cmpi eq, %c4_i32_68, %c0_i32_69 : i32
    %c1_i32_70 = arith.constant 1 : i32
    %143 = arith.select %142, %c1_i32_70, %c4_i32_68 : i32
    %144 = arith.remsi %141, %143 : i32
    %c0_i32_71 = arith.constant 0 : i32
    %145 = arith.cmpi ne, %144, %c0_i32_71 : i32
    %c0_i32_72 = arith.constant 0 : i32
    %146 = arith.cmpi slt, %144, %c0_i32_72 : i32
    %c0_i32_73 = arith.constant 0 : i32
    %147 = arith.cmpi slt, %143, %c0_i32_73 : i32
    %148 = arith.xori %146, %147 : i1
    %149 = arith.andi %148, %145 : i1
    %150 = arith.addi %144, %143 : i32
    %151 = arith.select %149, %150, %144 : i32
    %152 = arith.index_cast %151 : i32 to index
    %c0_74 = arith.constant 0 : index
    %c0_75 = arith.constant 0 : index
    %153 = vector.load %arg10[%152, %c0_74, %c0_75] : memref<4x2x32xf32, #tpu.memory_space<vmem>>, vector<1x2x32xf32>
    %154 = vector.shape_cast %153 : vector<1x2x32xf32> to vector<2x32xf32>
    %c4_i32_76 = arith.constant 4 : i32
    %155 = arith.cmpi sge, %141, %c4_i32_76 : i32
    %156 = arith.select %155, %5, %8 : vector<1x32xf32>
    %cst_77 = arith.constant dense<0.000000e+00> : vector<2x32xf32>
    %157 = tpu.matmul %154, %4, %cst_77 {dimension_numbers = #tpu.dot_dimension_numbers<[1], [0], [0], [1], [0, 0, 1, 1], [], []>} : vector<2x32xf32>, vector<32x32xf32>, vector<2x32xf32> -> vector<2x32xf32>
    %158 = vector.broadcast %156 : vector<1x32xf32> to vector<2x32xf32>
    %159 = arith.addf %157, %158 : vector<2x32xf32>
    %cst_78 = arith.constant dense<0.000000e+00> : vector<2x32xf32>
    %160 = tpu.matmul %131, %3, %cst_78 {dimension_numbers = #tpu.dot_dimension_numbers<[1], [0], [0], [1], [0, 0, 1, 1], [], []>} : vector<2x32xf32>, vector<32x32xf32>, vector<2x32xf32> -> vector<2x32xf32>
    %161 = arith.index_cast %c3_i32 : i32 to index
    %c0_79 = arith.constant 0 : index
    %c0_80 = arith.constant 0 : index
    %162 = vector.load %arg1[%161, %c0_79, %c0_80] : memref<8x2x32xf32, #tpu.memory_space<vmem>>, vector<1x2x32xf32>
    %163 = vector.shape_cast %162 : vector<1x2x32xf32> to vector<2x32xf32>
    %164 = arith.addf %163, %160 : vector<2x32xf32>
    %165 = arith.addf %164, %159 : vector<2x32xf32>
    %166 = arith.subf %165, %126 : vector<2x32xf32>
    %167 = vector.broadcast %7 : vector<1x32xf32> to vector<2x32xf32>
    %168 = arith.mulf %167, %166 : vector<2x32xf32>
    %169 = arith.addf %168, %126 : vector<2x32xf32>
    %170 = math.tanh %169 : vector<2x32xf32>
    %171 = arith.subf %170, %131 : vector<2x32xf32>
    %172 = vector.broadcast %6 : vector<1x32xf32> to vector<2x32xf32>
    %173 = arith.mulf %172, %171 : vector<2x32xf32>
    %174 = arith.addf %173, %131 : vector<2x32xf32>
    %175 = arith.index_cast %151 : i32 to index
    %c0_81 = arith.constant 0 : index
    %c0_82 = arith.constant 0 : index
    %176 = vector.load %arg10[%175, %c0_81, %c0_82] : memref<4x2x32xf32, #tpu.memory_space<vmem>>, vector<1x2x32xf32>
    %177 = vector.shape_cast %176 : vector<1x2x32xf32> to vector<2x32xf32>
    %178 = vector.shape_cast %174 : vector<2x32xf32> to vector<1x2x32xf32>
    tpu.vector_store %arg10[%175, %c0_81, %c0_82], %178 {strides = array<i32>} : memref<4x2x32xf32, #tpu.memory_space<vmem>>, vector<1x2x32xf32>,
    %179 = arith.index_cast %c3_i32 : i32 to index
    %c0_83 = arith.constant 0 : index
    %c0_84 = arith.constant 0 : index
    %180 = vector.load %arg7[%179, %c0_83, %c0_84] : memref<8x2x32xf32, #tpu.memory_space<vmem>>, vector<1x2x32xf32>
    %181 = vector.shape_cast %180 : vector<1x2x32xf32> to vector<2x32xf32>
    %182 = vector.shape_cast %174 : vector<2x32xf32> to vector<1x2x32xf32>
    tpu.vector_store %arg7[%179, %c0_83, %c0_84], %182 {strides = array<i32>} : memref<8x2x32xf32, #tpu.memory_space<vmem>>, vector<1x2x32xf32>,
    %c4_i32_85 = arith.constant 4 : i32
    %c8_i32_86 = arith.constant 8 : i32
    %183 = arith.muli %arg0, %c8_i32_86 : i32
    %184 = arith.addi %183, %c4_i32_85 : i32
    %c4_i32_87 = arith.constant 4 : i32
    %c0_i32_88 = arith.constant 0 : i32
    %185 = arith.cmpi eq, %c4_i32_87, %c0_i32_88 : i32
    %c1_i32_89 = arith.constant 1 : i32
    %186 = arith.select %185, %c1_i32_89, %c4_i32_87 : i32
    %187 = arith.remsi %184, %186 : i32
    %c0_i32_90 = arith.constant 0 : i32
    %188 = arith.cmpi ne, %187, %c0_i32_90 : i32
    %c0_i32_91 = arith.constant 0 : i32
    %189 = arith.cmpi slt, %187, %c0_i32_91 : i32
    %c0_i32_92 = arith.constant 0 : i32
    %190 = arith.cmpi slt, %186, %c0_i32_92 : i32
    %191 = arith.xori %189, %190 : i1
    %192 = arith.andi %191, %188 : i1
    %193 = arith.addi %187, %186 : i32
    %194 = arith.select %192, %193, %187 : i32
    %195 = arith.index_cast %194 : i32 to index
    %c0_93 = arith.constant 0 : index
    %c0_94 = arith.constant 0 : index
    %196 = vector.load %arg10[%195, %c0_93, %c0_94] : memref<4x2x32xf32, #tpu.memory_space<vmem>>, vector<1x2x32xf32>
    %197 = vector.shape_cast %196 : vector<1x2x32xf32> to vector<2x32xf32>
    %c4_i32_95 = arith.constant 4 : i32
    %198 = arith.cmpi sge, %184, %c4_i32_95 : i32
    %199 = arith.select %198, %5, %8 : vector<1x32xf32>
    %cst_96 = arith.constant dense<0.000000e+00> : vector<2x32xf32>
    %200 = tpu.matmul %197, %4, %cst_96 {dimension_numbers = #tpu.dot_dimension_numbers<[1], [0], [0], [1], [0, 0, 1, 1], [], []>} : vector<2x32xf32>, vector<32x32xf32>, vector<2x32xf32> -> vector<2x32xf32>
    %201 = vector.broadcast %199 : vector<1x32xf32> to vector<2x32xf32>
    %202 = arith.addf %200, %201 : vector<2x32xf32>
    %cst_97 = arith.constant dense<0.000000e+00> : vector<2x32xf32>
    %203 = tpu.matmul %174, %3, %cst_97 {dimension_numbers = #tpu.dot_dimension_numbers<[1], [0], [0], [1], [0, 0, 1, 1], [], []>} : vector<2x32xf32>, vector<32x32xf32>, vector<2x32xf32> -> vector<2x32xf32>
    %204 = arith.index_cast %c4_i32_85 : i32 to index
    %c0_98 = arith.constant 0 : index
    %c0_99 = arith.constant 0 : index
    %205 = vector.load %arg1[%204, %c0_98, %c0_99] : memref<8x2x32xf32, #tpu.memory_space<vmem>>, vector<1x2x32xf32>
    %206 = vector.shape_cast %205 : vector<1x2x32xf32> to vector<2x32xf32>
    %207 = arith.addf %206, %203 : vector<2x32xf32>
    %208 = arith.addf %207, %202 : vector<2x32xf32>
    %209 = arith.subf %208, %169 : vector<2x32xf32>
    %210 = vector.broadcast %7 : vector<1x32xf32> to vector<2x32xf32>
    %211 = arith.mulf %210, %209 : vector<2x32xf32>
    %212 = arith.addf %211, %169 : vector<2x32xf32>
    %213 = math.tanh %212 : vector<2x32xf32>
    %214 = arith.subf %213, %174 : vector<2x32xf32>
    %215 = vector.broadcast %6 : vector<1x32xf32> to vector<2x32xf32>
    %216 = arith.mulf %215, %214 : vector<2x32xf32>
    %217 = arith.addf %216, %174 : vector<2x32xf32>
    %218 = arith.index_cast %194 : i32 to index
    %c0_100 = arith.constant 0 : index
    %c0_101 = arith.constant 0 : index
    %219 = vector.load %arg10[%218, %c0_100, %c0_101] : memref<4x2x32xf32, #tpu.memory_space<vmem>>, vector<1x2x32xf32>
    %220 = vector.shape_cast %219 : vector<1x2x32xf32> to vector<2x32xf32>
    %221 = vector.shape_cast %217 : vector<2x32xf32> to vector<1x2x32xf32>
    tpu.vector_store %arg10[%218, %c0_100, %c0_101], %221 {strides = array<i32>} : memref<4x2x32xf32, #tpu.memory_space<vmem>>, vector<1x2x32xf32>,
    %222 = arith.index_cast %c4_i32_85 : i32 to index
    %c0_102 = arith.constant 0 : index
    %c0_103 = arith.constant 0 : index
    %223 = vector.load %arg7[%222, %c0_102, %c0_103] : memref<8x2x32xf32, #tpu.memory_space<vmem>>, vector<1x2x32xf32>
    %224 = vector.shape_cast %223 : vector<1x2x32xf32> to vector<2x32xf32>
    %225 = vector.shape_cast %217 : vector<2x32xf32> to vector<1x2x32xf32>
    tpu.vector_store %arg7[%222, %c0_102, %c0_103], %225 {strides = array<i32>} : memref<8x2x32xf32, #tpu.memory_space<vmem>>, vector<1x2x32xf32>,
    %c5_i32 = arith.constant 5 : i32
    %c8_i32_104 = arith.constant 8 : i32
    %226 = arith.muli %arg0, %c8_i32_104 : i32
    %227 = arith.addi %226, %c5_i32 : i32
    %c4_i32_105 = arith.constant 4 : i32
    %c0_i32_106 = arith.constant 0 : i32
    %228 = arith.cmpi eq, %c4_i32_105, %c0_i32_106 : i32
    %c1_i32_107 = arith.constant 1 : i32
    %229 = arith.select %228, %c1_i32_107, %c4_i32_105 : i32
    %230 = arith.remsi %227, %229 : i32
    %c0_i32_108 = arith.constant 0 : i32
    %231 = arith.cmpi ne, %230, %c0_i32_108 : i32
    %c0_i32_109 = arith.constant 0 : i32
    %232 = arith.cmpi slt, %230, %c0_i32_109 : i32
    %c0_i32_110 = arith.constant 0 : i32
    %233 = arith.cmpi slt, %229, %c0_i32_110 : i32
    %234 = arith.xori %232, %233 : i1
    %235 = arith.andi %234, %231 : i1
    %236 = arith.addi %230, %229 : i32
    %237 = arith.select %235, %236, %230 : i32
    %238 = arith.index_cast %237 : i32 to index
    %c0_111 = arith.constant 0 : index
    %c0_112 = arith.constant 0 : index
    %239 = vector.load %arg10[%238, %c0_111, %c0_112] : memref<4x2x32xf32, #tpu.memory_space<vmem>>, vector<1x2x32xf32>
    %240 = vector.shape_cast %239 : vector<1x2x32xf32> to vector<2x32xf32>
    %c4_i32_113 = arith.constant 4 : i32
    %241 = arith.cmpi sge, %227, %c4_i32_113 : i32
    %242 = arith.select %241, %5, %8 : vector<1x32xf32>
    %cst_114 = arith.constant dense<0.000000e+00> : vector<2x32xf32>
    %243 = tpu.matmul %240, %4, %cst_114 {dimension_numbers = #tpu.dot_dimension_numbers<[1], [0], [0], [1], [0, 0, 1, 1], [], []>} : vector<2x32xf32>, vector<32x32xf32>, vector<2x32xf32> -> vector<2x32xf32>
    %244 = vector.broadcast %242 : vector<1x32xf32> to vector<2x32xf32>
    %245 = arith.addf %243, %244 : vector<2x32xf32>
    %cst_115 = arith.constant dense<0.000000e+00> : vector<2x32xf32>
    %246 = tpu.matmul %217, %3, %cst_115 {dimension_numbers = #tpu.dot_dimension_numbers<[1], [0], [0], [1], [0, 0, 1, 1], [], []>} : vector<2x32xf32>, vector<32x32xf32>, vector<2x32xf32> -> vector<2x32xf32>
    %247 = arith.index_cast %c5_i32 : i32 to index
    %c0_116 = arith.constant 0 : index
    %c0_117 = arith.constant 0 : index
    %248 = vector.load %arg1[%247, %c0_116, %c0_117] : memref<8x2x32xf32, #tpu.memory_space<vmem>>, vector<1x2x32xf32>
    %249 = vector.shape_cast %248 : vector<1x2x32xf32> to vector<2x32xf32>
    %250 = arith.addf %249, %246 : vector<2x32xf32>
    %251 = arith.addf %250, %245 : vector<2x32xf32>
    %252 = arith.subf %251, %212 : vector<2x32xf32>
    %253 = vector.broadcast %7 : vector<1x32xf32> to vector<2x32xf32>
    %254 = arith.mulf %253, %252 : vector<2x32xf32>
    %255 = arith.addf %254, %212 : vector<2x32xf32>
    %256 = math.tanh %255 : vector<2x32xf32>
    %257 = arith.subf %256, %217 : vector<2x32xf32>
    %258 = vector.broadcast %6 : vector<1x32xf32> to vector<2x32xf32>
    %259 = arith.mulf %258, %257 : vector<2x32xf32>
    %260 = arith.addf %259, %217 : vector<2x32xf32>
    %261 = arith.index_cast %237 : i32 to index
    %c0_118 = arith.constant 0 : index
    %c0_119 = arith.constant 0 : index
    %262 = vector.load %arg10[%261, %c0_118, %c0_119] : memref<4x2x32xf32, #tpu.memory_space<vmem>>, vector<1x2x32xf32>
    %263 = vector.shape_cast %262 : vector<1x2x32xf32> to vector<2x32xf32>
    %264 = vector.shape_cast %260 : vector<2x32xf32> to vector<1x2x32xf32>
    tpu.vector_store %arg10[%261, %c0_118, %c0_119], %264 {strides = array<i32>} : memref<4x2x32xf32, #tpu.memory_space<vmem>>, vector<1x2x32xf32>,
    %265 = arith.index_cast %c5_i32 : i32 to index
    %c0_120 = arith.constant 0 : index
    %c0_121 = arith.constant 0 : index
    %266 = vector.load %arg7[%265, %c0_120, %c0_121] : memref<8x2x32xf32, #tpu.memory_space<vmem>>, vector<1x2x32xf32>
    %267 = vector.shape_cast %266 : vector<1x2x32xf32> to vector<2x32xf32>
    %268 = vector.shape_cast %260 : vector<2x32xf32> to vector<1x2x32xf32>
    tpu.vector_store %arg7[%265, %c0_120, %c0_121], %268 {strides = array<i32>} : memref<8x2x32xf32, #tpu.memory_space<vmem>>, vector<1x2x32xf32>,
    %c6_i32 = arith.constant 6 : i32
    %c8_i32_122 = arith.constant 8 : i32
    %269 = arith.muli %arg0, %c8_i32_122 : i32
    %270 = arith.addi %269, %c6_i32 : i32
    %c4_i32_123 = arith.constant 4 : i32
    %c0_i32_124 = arith.constant 0 : i32
    %271 = arith.cmpi eq, %c4_i32_123, %c0_i32_124 : i32
    %c1_i32_125 = arith.constant 1 : i32
    %272 = arith.select %271, %c1_i32_125, %c4_i32_123 : i32
    %273 = arith.remsi %270, %272 : i32
    %c0_i32_126 = arith.constant 0 : i32
    %274 = arith.cmpi ne, %273, %c0_i32_126 : i32
    %c0_i32_127 = arith.constant 0 : i32
    %275 = arith.cmpi slt, %273, %c0_i32_127 : i32
    %c0_i32_128 = arith.constant 0 : i32
    %276 = arith.cmpi slt, %272, %c0_i32_128 : i32
    %277 = arith.xori %275, %276 : i1
    %278 = arith.andi %277, %274 : i1
    %279 = arith.addi %273, %272 : i32
    %280 = arith.select %278, %279, %273 : i32
    %281 = arith.index_cast %280 : i32 to index
    %c0_129 = arith.constant 0 : index
    %c0_130 = arith.constant 0 : index
    %282 = vector.load %arg10[%281, %c0_129, %c0_130] : memref<4x2x32xf32, #tpu.memory_space<vmem>>, vector<1x2x32xf32>
    %283 = vector.shape_cast %282 : vector<1x2x32xf32> to vector<2x32xf32>
    %c4_i32_131 = arith.constant 4 : i32
    %284 = arith.cmpi sge, %270, %c4_i32_131 : i32
    %285 = arith.select %284, %5, %8 : vector<1x32xf32>
    %cst_132 = arith.constant dense<0.000000e+00> : vector<2x32xf32>
    %286 = tpu.matmul %283, %4, %cst_132 {dimension_numbers = #tpu.dot_dimension_numbers<[1], [0], [0], [1], [0, 0, 1, 1], [], []>} : vector<2x32xf32>, vector<32x32xf32>, vector<2x32xf32> -> vector<2x32xf32>
    %287 = vector.broadcast %285 : vector<1x32xf32> to vector<2x32xf32>
    %288 = arith.addf %286, %287 : vector<2x32xf32>
    %cst_133 = arith.constant dense<0.000000e+00> : vector<2x32xf32>
    %289 = tpu.matmul %260, %3, %cst_133 {dimension_numbers = #tpu.dot_dimension_numbers<[1], [0], [0], [1], [0, 0, 1, 1], [], []>} : vector<2x32xf32>, vector<32x32xf32>, vector<2x32xf32> -> vector<2x32xf32>
    %290 = arith.index_cast %c6_i32 : i32 to index
    %c0_134 = arith.constant 0 : index
    %c0_135 = arith.constant 0 : index
    %291 = vector.load %arg1[%290, %c0_134, %c0_135] : memref<8x2x32xf32, #tpu.memory_space<vmem>>, vector<1x2x32xf32>
    %292 = vector.shape_cast %291 : vector<1x2x32xf32> to vector<2x32xf32>
    %293 = arith.addf %292, %289 : vector<2x32xf32>
    %294 = arith.addf %293, %288 : vector<2x32xf32>
    %295 = arith.subf %294, %255 : vector<2x32xf32>
    %296 = vector.broadcast %7 : vector<1x32xf32> to vector<2x32xf32>
    %297 = arith.mulf %296, %295 : vector<2x32xf32>
    %298 = arith.addf %297, %255 : vector<2x32xf32>
    %299 = math.tanh %298 : vector<2x32xf32>
    %300 = arith.subf %299, %260 : vector<2x32xf32>
    %301 = vector.broadcast %6 : vector<1x32xf32> to vector<2x32xf32>
    %302 = arith.mulf %301, %300 : vector<2x32xf32>
    %303 = arith.addf %302, %260 : vector<2x32xf32>
    %304 = arith.index_cast %280 : i32 to index
    %c0_136 = arith.constant 0 : index
    %c0_137 = arith.constant 0 : index
    %305 = vector.load %arg10[%304, %c0_136, %c0_137] : memref<4x2x32xf32, #tpu.memory_space<vmem>>, vector<1x2x32xf32>
    %306 = vector.shape_cast %305 : vector<1x2x32xf32> to vector<2x32xf32>
    %307 = vector.shape_cast %303 : vector<2x32xf32> to vector<1x2x32xf32>
    tpu.vector_store %arg10[%304, %c0_136, %c0_137], %307 {strides = array<i32>} : memref<4x2x32xf32, #tpu.memory_space<vmem>>, vector<1x2x32xf32>,
    %308 = arith.index_cast %c6_i32 : i32 to index
    %c0_138 = arith.constant 0 : index
    %c0_139 = arith.constant 0 : index
    %309 = vector.load %arg7[%308, %c0_138, %c0_139] : memref<8x2x32xf32, #tpu.memory_space<vmem>>, vector<1x2x32xf32>
    %310 = vector.shape_cast %309 : vector<1x2x32xf32> to vector<2x32xf32>
    %311 = vector.shape_cast %303 : vector<2x32xf32> to vector<1x2x32xf32>
    tpu.vector_store %arg7[%308, %c0_138, %c0_139], %311 {strides = array<i32>} : memref<8x2x32xf32, #tpu.memory_space<vmem>>, vector<1x2x32xf32>,
    %c7_i32 = arith.constant 7 : i32
    %c8_i32_140 = arith.constant 8 : i32
    %312 = arith.muli %arg0, %c8_i32_140 : i32
    %313 = arith.addi %312, %c7_i32 : i32
    %c4_i32_141 = arith.constant 4 : i32
    %c0_i32_142 = arith.constant 0 : i32
    %314 = arith.cmpi eq, %c4_i32_141, %c0_i32_142 : i32
    %c1_i32_143 = arith.constant 1 : i32
    %315 = arith.select %314, %c1_i32_143, %c4_i32_141 : i32
    %316 = arith.remsi %313, %315 : i32
    %c0_i32_144 = arith.constant 0 : i32
    %317 = arith.cmpi ne, %316, %c0_i32_144 : i32
    %c0_i32_145 = arith.constant 0 : i32
    %318 = arith.cmpi slt, %316, %c0_i32_145 : i32
    %c0_i32_146 = arith.constant 0 : i32
    %319 = arith.cmpi slt, %315, %c0_i32_146 : i32
    %320 = arith.xori %318, %319 : i1
    %321 = arith.andi %320, %317 : i1
    %322 = arith.addi %316, %315 : i32
    %323 = arith.select %321, %322, %316 : i32
    %324 = arith.index_cast %323 : i32 to index
    %c0_147 = arith.constant 0 : index
    %c0_148 = arith.constant 0 : index
    %325 = vector.load %arg10[%324, %c0_147, %c0_148] : memref<4x2x32xf32, #tpu.memory_space<vmem>>, vector<1x2x32xf32>
    %326 = vector.shape_cast %325 : vector<1x2x32xf32> to vector<2x32xf32>
    %c4_i32_149 = arith.constant 4 : i32
    %327 = arith.cmpi sge, %313, %c4_i32_149 : i32
    %328 = arith.select %327, %5, %8 : vector<1x32xf32>
    %cst_150 = arith.constant dense<0.000000e+00> : vector<2x32xf32>
    %329 = tpu.matmul %326, %4, %cst_150 {dimension_numbers = #tpu.dot_dimension_numbers<[1], [0], [0], [1], [0, 0, 1, 1], [], []>} : vector<2x32xf32>, vector<32x32xf32>, vector<2x32xf32> -> vector<2x32xf32>
    %330 = vector.broadcast %328 : vector<1x32xf32> to vector<2x32xf32>
    %331 = arith.addf %329, %330 : vector<2x32xf32>
    %cst_151 = arith.constant dense<0.000000e+00> : vector<2x32xf32>
    %332 = tpu.matmul %303, %3, %cst_151 {dimension_numbers = #tpu.dot_dimension_numbers<[1], [0], [0], [1], [0, 0, 1, 1], [], []>} : vector<2x32xf32>, vector<32x32xf32>, vector<2x32xf32> -> vector<2x32xf32>
    %333 = arith.index_cast %c7_i32 : i32 to index
    %c0_152 = arith.constant 0 : index
    %c0_153 = arith.constant 0 : index
    %334 = vector.load %arg1[%333, %c0_152, %c0_153] : memref<8x2x32xf32, #tpu.memory_space<vmem>>, vector<1x2x32xf32>
    %335 = vector.shape_cast %334 : vector<1x2x32xf32> to vector<2x32xf32>
    %336 = arith.addf %335, %332 : vector<2x32xf32>
    %337 = arith.addf %336, %331 : vector<2x32xf32>
    %338 = arith.subf %337, %298 : vector<2x32xf32>
    %339 = vector.broadcast %7 : vector<1x32xf32> to vector<2x32xf32>
    %340 = arith.mulf %339, %338 : vector<2x32xf32>
    %341 = arith.addf %340, %298 : vector<2x32xf32>
    %342 = math.tanh %341 : vector<2x32xf32>
    %343 = arith.subf %342, %303 : vector<2x32xf32>
    %344 = vector.broadcast %6 : vector<1x32xf32> to vector<2x32xf32>
    %345 = arith.mulf %344, %343 : vector<2x32xf32>
    %346 = arith.addf %345, %303 : vector<2x32xf32>
    %347 = arith.index_cast %323 : i32 to index
    %c0_154 = arith.constant 0 : index
    %c0_155 = arith.constant 0 : index
    %348 = vector.load %arg10[%347, %c0_154, %c0_155] : memref<4x2x32xf32, #tpu.memory_space<vmem>>, vector<1x2x32xf32>
    %349 = vector.shape_cast %348 : vector<1x2x32xf32> to vector<2x32xf32>
    %350 = vector.shape_cast %346 : vector<2x32xf32> to vector<1x2x32xf32>
    tpu.vector_store %arg10[%347, %c0_154, %c0_155], %350 {strides = array<i32>} : memref<4x2x32xf32, #tpu.memory_space<vmem>>, vector<1x2x32xf32>,
    %351 = arith.index_cast %c7_i32 : i32 to index
    %c0_156 = arith.constant 0 : index
    %c0_157 = arith.constant 0 : index
    %352 = vector.load %arg7[%351, %c0_156, %c0_157] : memref<8x2x32xf32, #tpu.memory_space<vmem>>, vector<1x2x32xf32>
    %353 = vector.shape_cast %352 : vector<1x2x32xf32> to vector<2x32xf32>
    %354 = vector.shape_cast %346 : vector<2x32xf32> to vector<1x2x32xf32>
    tpu.vector_store %arg7[%351, %c0_156, %c0_157], %354 {strides = array<i32>} : memref<8x2x32xf32, #tpu.memory_space<vmem>>, vector<1x2x32xf32>,
    %c8_i32_158 = arith.constant 8 : i32
    %c0_159 = arith.constant 0 : index
    %c0_160 = arith.constant 0 : index
    %355 = vector.load %arg8[%c0_159, %c0_160] : memref<2x32xf32, #tpu.memory_space<vmem>>, vector<2x32xf32>
    tpu.vector_store %arg8[%c0_159, %c0_160], %346 {strides = array<i32>} : memref<2x32xf32, #tpu.memory_space<vmem>>, vector<2x32xf32>,
    %c0_161 = arith.constant 0 : index
    %c0_162 = arith.constant 0 : index
    %356 = vector.load %arg9[%c0_161, %c0_162] : memref<2x32xf32, #tpu.memory_space<vmem>>, vector<2x32xf32>
    tpu.vector_store %arg9[%c0_161, %c0_162], %341 {strides = array<i32>} : memref<2x32xf32, #tpu.memory_space<vmem>>, vector<2x32xf32>,
    return
  }
  func.func @transform_0(%arg0: i32) -> (i32, i32, i32) {
    %c0_i32 = arith.constant 0 : i32
    %c0_i32_0 = arith.constant 0 : i32
    %c0_i32_1 = arith.constant 0 : i32
    return %arg0, %c0_i32, %c0_i32_0 : i32, i32, i32
  }
  func.func @transform_1(%arg0: i32) -> (i32, i32) {
    %c0_i32 = arith.constant 0 : i32
    %c0_i32_0 = arith.constant 0 : i32
    %c0_i32_1 = arith.constant 0 : i32
    return %c0_i32, %c0_i32_0 : i32, i32
  }
  func.func @transform_2(%arg0: i32) -> (i32, i32) {
    %c0_i32 = arith.constant 0 : i32
    %c0_i32_0 = arith.constant 0 : i32
    %c0_i32_1 = arith.constant 0 : i32
    return %c0_i32, %c0_i32_0 : i32, i32
  }
  func.func @transform_3(%arg0: i32) -> (i32, i32) {
    %c0_i32 = arith.constant 0 : i32
    %c0_i32_0 = arith.constant 0 : i32
    %c0_i32_1 = arith.constant 0 : i32
    return %c0_i32, %c0_i32_0 : i32, i32
  }
  func.func @transform_4(%arg0: i32) -> (i32, i32) {
    %c0_i32 = arith.constant 0 : i32
    %c0_i32_0 = arith.constant 0 : i32
    %c0_i32_1 = arith.constant 0 : i32
    return %c0_i32, %c0_i32_0 : i32, i32
  }
  func.func @transform_5(%arg0: i32) -> (i32, i32) {
    %c0_i32 = arith.constant 0 : i32
    %c0_i32_0 = arith.constant 0 : i32
    %c0_i32_1 = arith.constant 0 : i32
    return %c0_i32, %c0_i32_0 : i32, i32
  }
  func.func @transform_6(%arg0: i32) -> (i32, i32, i32) {
    %c0_i32 = arith.constant 0 : i32
    %c0_i32_0 = arith.constant 0 : i32
    %c0_i32_1 = arith.constant 0 : i32
    return %arg0, %c0_i32, %c0_i32_0 : i32, i32, i32
  }
}

</mosaic_0001>

<llo_original>
// kernel: tpu_custom_call.1
$region0: #{tpu_custom_call.1}
  #allocation0 [shape = 'u32[]', space=smem, size = 0x4, offset = 0x4, fixed_abs, tag = 'smem constant byte address 0x4 - core index']
  #allocation1 [shape = 'u32[144,128]{1,0:T(1,128)}', space=vmem, size = 0x12000, scoped, tag = 'internal scratch']
  #allocation2 [shape = 'f32[2,32]{1,0:T(2,128)}', space=vmem, size = 0x400, scoped, tag = 'scratch operand']
  #allocation3 [shape = 'f32[2,32]{1,0:T(2,128)}', space=vmem, size = 0x400, scoped, tag = 'scratch operand']
  #allocation4 [shape = 'f32[4,2,32]{2,1,0:T(2,128)}', space=vmem, size = 0x1000, scoped, tag = 'scratch operand']
  %s0 = inlined_call_operand.hbm [shape: f32[8,2,32], index: 0, kind: input, shape index: {}]
  %s1 = inlined_call_operand.hbm [shape: f32[32,32], index: 1, kind: input, shape index: {}]
  %s2 = inlined_call_operand.hbm [shape: f32[32,32], index: 2, kind: input, shape index: {}]
  %s3 = inlined_call_operand.vmem [shape: f32[1,32], index: 3, kind: input, shape index: {}]
  %s4 = inlined_call_operand.vmem [shape: f32[1,32], index: 4, kind: input, shape index: {}]
  %s5 = inlined_call_operand.vmem [shape: f32[1,32], index: 5, kind: input, shape index: {}]
  %s6 = inlined_call_operand.hbm [shape: f32[8,2,32], index: 6, kind: output, shape index: {}]
  %s7 = sld [smem:[#allocation0]]
  $region50: #{tpu_custom_call.1} parent=0
    _
  %s9 = ssub.s32 1, %s7
  %s10 = scalar_select 0, %s9, %s7
  $region1: #{tpu_custom_call.1} parent=0
    #allocation5 [shape = 'u8[8192]{0}', space=vmem, size = 0x2000, scoped, tag = 'input window, operand 0, single buffered']
    #allocation6 [shape = 's32[1]{0}', space=sflag, size = 0x4, scoped, tag = 'scoped memory for tpu_custom_call.1']
    #allocation7 [shape = 's32[1]{0}', space=sflag, size = 0x4, scoped, tag = 'scoped memory for tpu_custom_call.1']
    #allocation8 [shape = 'u8[16384]{0}', space=vmem, size = 0x4000, scoped, tag = 'input window, operand 1, single buffered']
    #allocation9 [shape = 's32[1]{0}', space=sflag, size = 0x4, scoped, tag = 'scoped memory for tpu_custom_call.1']
    #allocation10 [shape = 'u8[16384]{0}', space=vmem, size = 0x4000, scoped, tag = 'input window, operand 2, single buffered']
    #allocation11 [shape = 'u8[8192]{0}', space=vmem, size = 0x2000, scoped, tag = 'output window, operand 0, single buffered']
    %11 = vsyncpa [#allocation6], 0
    %12 = vsyncpa [#allocation9], 0
    %13 = vsyncpa [#allocation7], 0
    // Predicated region
    $region2: #{tpu_custom_call.1} parent=1 // pred_check
      _
    $region3: #{tpu_custom_call.1} parent=1 // pred_check_branch
      %15 = sbr.rel (0) target = $region5
    $region4: #{tpu_custom_call.1} parent=1 // pred_region
      %s17 = ssub.s32 256, 256
      %18 = vsyncadd [#allocation6], %s17
      %s19 = sshll.u32 [#allocation5], 4
      %s20 = int_to_ptr.vmem [resolvable:$true] %s19
      %25 = dma.hbm_to_vmem [thread:$0]  %s0, 256, %s20, [#allocation6], 32, 32, 2
    $region5: #{tpu_custom_call.1} parent=1 // pred_fallthru
      _
    // Predicated region
    $region6: #{tpu_custom_call.1} parent=1 // pred_check
      _
    $region7: #{tpu_custom_call.1} parent=1 // pred_check_branch
      %27 = sbr.rel (0) target = $region9
    $region8: #{tpu_custom_call.1} parent=1 // pred_region
      %s29 = ssub.s32 512, 512
      %30 = vsyncadd [#allocation9], %s29
      %s31 = sshll.u32 [#allocation8], 4
      %s32 = int_to_ptr.vmem [resolvable:$true] %s31
      %37 = dma.hbm_to_vmem [thread:$0]  %s1, 512, %s32, [#allocation9], 128, 128, 8
    $region9: #{tpu_custom_call.1} parent=1 // pred_fallthru
      _
    // Predicated region
    $region10: #{tpu_custom_call.1} parent=1 // pred_check
      _
    $region11: #{tpu_custom_call.1} parent=1 // pred_check_branch
      %39 = sbr.rel (0) target = $region13
    $region12: #{tpu_custom_call.1} parent=1 // pred_region
      %s41 = ssub.s32 512, 512
      %42 = vsyncadd [#allocation9], %s41
      %s43 = sshll.u32 [#allocation10], 4
      %s44 = int_to_ptr.vmem [resolvable:$true] %s43
      %49 = dma.hbm_to_vmem [thread:$0]  %s2, 512, %s44, [#allocation9], 128, 128, 8
    $region13: #{tpu_custom_call.1} parent=1 // pred_fallthru
      _
    // Predicated region
    $region14: #{tpu_custom_call.1} parent=1 // pred_check
      _
    $region15: #{tpu_custom_call.1} parent=1 // pred_check_branch
      %51 = sbr.rel (0) target = $region17
    $region16: #{tpu_custom_call.1} parent=1 // pred_region
      _
    $region17: #{tpu_custom_call.1} parent=1 // pred_fallthru
      _
    // Predicated region
    $region18: #{tpu_custom_call.1} parent=1 // pred_check
      _
    $region19: #{tpu_custom_call.1} parent=1 // pred_check_branch
      %53 = sbr.rel (0) target = $region21
    $region20: #{tpu_custom_call.1} parent=1 // pred_region
      _
    $region21: #{tpu_custom_call.1} parent=1 // pred_fallthru
      _
    // Predicated region
    $region22: #{tpu_custom_call.1} parent=1 // pred_check
      _
    $region23: #{tpu_custom_call.1} parent=1 // pred_check_branch
      %55 = sbr.rel (0) target = $region25
    $region24: #{tpu_custom_call.1} parent=1 // pred_region
      _
    $region25: #{tpu_custom_call.1} parent=1 // pred_fallthru
      _
    // Predicated region
    $region26: #{tpu_custom_call.1} parent=1 // pred_check
      _
    $region27: #{tpu_custom_call.1} parent=1 // pred_check_branch
      %57 = sbr.rel (0) target = $region29
    $region28: #{tpu_custom_call.1} parent=1 // pred_region
      %58 = dma.done [#allocation6], 256
    $region29: #{tpu_custom_call.1} parent=1 // pred_fallthru
      _
    // Predicated region
    $region30: #{tpu_custom_call.1} parent=1 // pred_check
      _
    $region31: #{tpu_custom_call.1} parent=1 // pred_check_branch
      %60 = sbr.rel (0) target = $region33
    $region32: #{tpu_custom_call.1} parent=1 // pred_region
      %61 = dma.done [#allocation9], 512
    $region33: #{tpu_custom_call.1} parent=1 // pred_fallthru
      _
    // Predicated region
    $region34: #{tpu_custom_call.1} parent=1 // pred_check
      _
    $region35: #{tpu_custom_call.1} parent=1 // pred_check_branch
      %63 = sbr.rel (0) target = $region37
    $region36: #{tpu_custom_call.1} parent=1 // pred_region
      %64 = dma.done [#allocation9], 512
    $region37: #{tpu_custom_call.1} parent=1 // pred_fallthru
      _
    %p65 = scmp.eq.s32.totalorder 0, 0
    // Predicated region
    $region38: #{tpu_custom_call.1} parent=1 // pred_check
      %p66 = pneg %p65
    $region39: #{tpu_custom_call.1} parent=1 // pred_check_branch
      %68 = sbr.rel (%p66) target = $region41
    $region40: #{tpu_custom_call.1} parent=1 // pred_region
      %vm69 = vcmask 254976
      %70 = vst.msk [vmem:[#allocation2] sm:$0x3] %vm69, 0.0
      %71 = vst.msk [vmem:[#allocation3] sm:$0x3] %vm69, 0.0
      %72 = vst.msk [vmem:[#allocation4] sm:$0x3] %vm69, 0.0
      %73 = vst.msk [vmem:[#allocation4 + $0x2] sm:$0x3] %vm69, 0.0
      %74 = vst.msk [vmem:[#allocation4 + $0x4] sm:$0x3] %vm69, 0.0
      %75 = vst.msk [vmem:[#allocation4 + $0x6] sm:$0x3] %vm69, 0.0
    $region41: #{tpu_custom_call.1} parent=1 // pred_fallthru
      _
    %v76 = vld [vmem:[#allocation8] sm:$0xff]
    %v77 = vld [vmem:[#allocation8 + $0x8] sm:$0xff]
    %v78 = vld [vmem:[#allocation8 + $0x10] sm:$0xff]
    %v79 = vld [vmem:[#allocation8 + $0x18] sm:$0xff]
    %v80 = vld [vmem:[#allocation10] sm:$0xff]
    %v81 = vld [vmem:[#allocation10 + $0x8] sm:$0xff]
    %v82 = vld [vmem:[#allocation10 + $0x10] sm:$0xff]
    %v83 = vld [vmem:[#allocation10 + $0x18] sm:$0xff]
    %v84 = vld [vmem:[%s3] sm:$0x1]
    %v85 = vld [vmem:[%s4] sm:$0x1]
    %v86 = vld [vmem:[%s5] sm:$0x1]
    %v87 = vld [vmem:[#allocation2] sm:$0x3]
    %v88 = vld [vmem:[#allocation3] sm:$0x3]
    %s89 = smul.u32 0, 8
    %p90 = scmp.lt.s32.totalorder %s89, 0
    %s91 = ssub.s32 0, %s89
    %s92 = scalar_select %p90, %s91, %s89
    %s93 = sand.u32 %s92, 3
    %s94 = ssub.s32 0, %s93
    %s95 = scalar_select %p90, %s94, %s93
    %p96 = scmp.ne.s32.totalorder %s95, 0
    %p97 = scmp.lt.s32.totalorder %s95, 0
    %p98 = pnand %p97, %p96
    %p99 = pneg %p98
    %s100 = sadd.s32 %s95, 4
    %s101 = scalar_select %p99, %s100, %s95
    %s102 = smul.u32 %s101, 2
    %s103 = scalar_lea.vmem [#allocation4], %s102
    %v104 = vld [vmem:[%s103] sm:$0x3]
    %p105 = scmp.ge.s32.totalorder %s89, 4
    %s106 = scalar_select %p105, 1, 0
    %v107 = vstv %s106
    %vm108 = vcmp.eq.s32.totalorder %v107, 1
    %v109 = vsel %vm108, %v84, 0.0
    %v111 = vlaneseq
    %v112 = vshrl.u32 %v111, 7
    %v113 = vsub.s32 0, %v112
    %v114 = vrot.slane %v109, %v113
    %vm116 = vcmask 261120
    %v118 = vsel %vm116, %v104, 0
    %120 = vmatprep.subr.mxu0 0.0
    %121 = vmatpush1.msra.mxu0 0.0
    %122 = vmatprep.subr.mxu0 0.0
    %123 = vmatpush1.msra.mxu0 0.0
    %124 = vmatprep.subr.mxu0 0.0
    %125 = vmatpush1.msra.mxu0 0.0
    %126 = vmatprep.subr.mxu0 0.0
    %127 = vmatpush1.msra.mxu0 0.0
    %128 = vmatprep.subr.mxu0 0.0
    %129 = vmatpush1.msra.mxu0 0.0
    %130 = vmatprep.subr.mxu0 0.0
    %131 = vmatpush1.msra.mxu0 0.0
    %132 = vmatprep.subr.mxu0 0.0
    %133 = vmatpush1.msra.mxu0 0.0
    %134 = vmatprep.subr.mxu0 0.0
    %135 = vmatpush1.msra.mxu0 0.0
    %136 = vmatprep.subr.mxu0 0.0
    %137 = vmatpush1.msra.mxu0 0.0
    %138 = vmatprep.subr.mxu0 0.0
    %139 = vmatpush1.msra.mxu0 0.0
    %140 = vmatprep.subr.mxu0 0.0
    %141 = vmatpush1.msra.mxu0 0.0
    %142 = vmatprep.subr.mxu0 0.0
    %143 = vmatpush1.msra.mxu0 0.0
    %144 = vmatprep.subr.mxu0 0.0
    %145 = vmatpush1.msra.mxu0 %v83
    %146 = vmatprep.subr.mxu0 0.0
    %147 = vmatpush1.msra.mxu0 %v82
    %148 = vmatprep.subr.mxu0 0.0
    %149 = vmatpush1.msra.mxu0 %v81
    %150 = vmatprep.subr.mxu0 0.0
    %151 = vmatpush1.msra.mxu0 %v80
    %152 = vmatprep.subr.mxu0 0.0
    %153 = vmatpush2.msra.mxu0 0.0
    %154 = vmatprep.subr.mxu0 0.0
    %155 = vmatpush2.msra.mxu0 0.0
    %156 = vmatprep.subr.mxu0 0.0
    %157 = vmatpush2.msra.mxu0 0.0
    %158 = vmatprep.subr.mxu0 0.0
    %159 = vmatpush2.msra.mxu0 0.0
    %160 = vmatprep.subr.mxu0 0.0
    %161 = vmatpush2.msra.mxu0 0.0
    %162 = vmatprep.subr.mxu0 0.0
    %163 = vmatpush2.msra.mxu0 0.0
    %164 = vmatprep.subr.mxu0 0.0
    %165 = vmatpush2.msra.mxu0 0.0
    %166 = vmatprep.subr.mxu0 0.0
    %167 = vmatpush2.msra.mxu0 0.0
    %168 = vmatprep.subr.mxu0 0.0
    %169 = vmatpush2.msra.mxu0 0.0
    %170 = vmatprep.subr.mxu0 0.0
    %171 = vmatpush2.msra.mxu0 0.0
    %172 = vmatprep.subr.mxu0 0.0
    %173 = vmatpush2.msra.mxu0 0.0
    %174 = vmatprep.subr.mxu0 0.0
    %175 = vmatpush2.msra.mxu0 0.0
    %176 = vmatprep.subr.mxu0 0.0
    %177 = vmatpush2.msra.mxu0 0.0
    %178 = vmatprep.subr.mxu0 0.0
    %179 = vmatpush2.msra.mxu0 0.0
    %180 = vmatprep.subr.mxu0 0.0
    %181 = vmatpush2.msra.mxu0 0.0
    %182 = vmatprep.subr.mxu0 0.0
    %183 = vmatpush2.msra.mxu0 0.0
    %184 = vmatprep.mubr.f32.mxu0 0.0
    %185 = vmatmul.mubr.f32.gmra.mxu0 %v118
    %v186 = vpop.f32.mrf.mxu0
    %v187 = vadd.f32 %v114, %v186
    %v188 = vpop.f32.mrf.mxu0
    %189 = vdwg.mxu0
    %v191 = vsel %vm116, %v87, 0
    %193 = vmatprep.subr.mxu0 0.0
    %194 = vmatpush1.msra.mxu0 0.0
    %195 = vmatprep.subr.mxu0 0.0
    %196 = vmatpush1.msra.mxu0 0.0
    %197 = vmatprep.subr.mxu0 0.0
    %198 = vmatpush1.msra.mxu0 0.0
    %199 = vmatprep.subr.mxu0 0.0
    %200 = vmatpush1.msra.mxu0 0.0
    %201 = vmatprep.subr.mxu0 0.0
    %202 = vmatpush1.msra.mxu0 0.0
    %203 = vmatprep.subr.mxu0 0.0
    %204 = vmatpush1.msra.mxu0 0.0
    %205 = vmatprep.subr.mxu0 0.0
    %206 = vmatpush1.msra.mxu0 0.0
    %207 = vmatprep.subr.mxu0 0.0
    %208 = vmatpush1.msra.mxu0 0.0
    %209 = vmatprep.subr.mxu0 0.0
    %210 = vmatpush1.msra.mxu0 0.0
    %211 = vmatprep.subr.mxu0 0.0
    %212 = vmatpush1.msra.mxu0 0.0
    %213 = vmatprep.subr.mxu0 0.0
    %214 = vmatpush1.msra.mxu0 0.0
    %215 = vmatprep.subr.mxu0 0.0
    %216 = vmatpush1.msra.mxu0 0.0
    %217 = vmatprep.subr.mxu0 0.0
    %218 = vmatpush1.msra.mxu0 %v79
    %219 = vmatprep.subr.mxu0 0.0
    %220 = vmatpush1.msra.mxu0 %v78
    %221 = vmatprep.subr.mxu0 0.0
    %222 = vmatpush1.msra.mxu0 %v77
    %223 = vmatprep.subr.mxu0 0.0
    %224 = vmatpush1.msra.mxu0 %v76
    %225 = vmatprep.subr.mxu0 0.0
    %226 = vmatpush2.msra.mxu0 0.0
    %227 = vmatprep.subr.mxu0 0.0
    %228 = vmatpush2.msra.mxu0 0.0
    %229 = vmatprep.subr.mxu0 0.0
    %230 = vmatpush2.msra.mxu0 0.0
    %231 = vmatprep.subr.mxu0 0.0
    %232 = vmatpush2.msra.mxu0 0.0
    %233 = vmatprep.subr.mxu0 0.0
    %234 = vmatpush2.msra.mxu0 0.0
    %235 = vmatprep.subr.mxu0 0.0
    %236 = vmatpush2.msra.mxu0 0.0
    %237 = vmatprep.subr.mxu0 0.0
    %238 = vmatpush2.msra.mxu0 0.0
    %239 = vmatprep.subr.mxu0 0.0
    %240 = vmatpush2.msra.mxu0 0.0
    %241 = vmatprep.subr.mxu0 0.0
    %242 = vmatpush2.msra.mxu0 0.0
    %243 = vmatprep.subr.mxu0 0.0
    %244 = vmatpush2.msra.mxu0 0.0
    %245 = vmatprep.subr.mxu0 0.0
    %246 = vmatpush2.msra.mxu0 0.0
    %247 = vmatprep.subr.mxu0 0.0
    %248 = vmatpush2.msra.mxu0 0.0
    %249 = vmatprep.subr.mxu0 0.0
    %250 = vmatpush2.msra.mxu0 0.0
    %251 = vmatprep.subr.mxu0 0.0
    %252 = vmatpush2.msra.mxu0 0.0
    %253 = vmatprep.subr.mxu0 0.0
    %254 = vmatpush2.msra.mxu0 0.0
    %255 = vmatprep.subr.mxu0 0.0
    %256 = vmatpush2.msra.mxu0 0.0
    %257 = vmatprep.mubr.f32.mxu0 0.0
    %258 = vmatmul.mubr.f32.gmra.mxu0 %v191
    %v259 = vpop.f32.mrf.mxu0
    %v260 = vadd.f32 0.0, %v259
    %v261 = vpop.f32.mrf.mxu0
    %262 = vdwg.mxu0
    %v263 = vld [vmem:[#allocation5] sm:$0x3]
    %v264 = vadd.f32 %v263, %v260
    %v265 = vadd.f32 %v264, %v187
    %v266 = vsub.f32 %v265, %v88
    %v268 = vlaneseq
    %v269 = vshrl.u32 %v268, 7
    %v270 = vsub.s32 0, %v269
    %v271 = vrot.slane %v86, %v270
    %v273 = vmul.f32 %v271, %v266
    %v274 = vadd.f32 %v273, %v88
    %v275 = vtanh.pop %v274
    %v276 = vsub.f32 %v275, %v87
    %v278 = vlaneseq
    %v279 = vshrl.u32 %v278, 7
    %v280 = vsub.s32 0, %v279
    %v281 = vrot.slane %v85, %v280
    %v283 = vmul.f32 %v281, %v276
    %v284 = vadd.f32 %v283, %v87
    %vm285 = vcmask 254976
    %286 = vst.msk [vmem:[%s103] sm:$0x3] %vm285, %v284
    %287 = vst.msk [vmem:[#allocation11] sm:$0x3] %vm285, %v284
    %s288 = sadd.s32 %s89, 1
    %p289 = scmp.lt.s32.totalorder %s288, 0
    %s290 = ssub.s32 0, %s288
    %s291 = scalar_select %p289, %s290, %s288
    %s292 = sand.u32 %s291, 3
    %s293 = ssub.s32 0, %s292
    %s294 = scalar_select %p289, %s293, %s292
    %p295 = scmp.ne.s32.totalorder %s294, 0
    %p296 = scmp.lt.s32.totalorder %s294, 0
    %p297 = pnand %p296, %p295
    %p298 = pneg %p297
    %s299 = sadd.s32 %s294, 4
    %s300 = scalar_select %p298, %s299, %s294
    %s301 = smul.u32 %s300, 2
    %s302 = scalar_lea.vmem [#allocation4], %s301
    %v303 = vld [vmem:[%s302] sm:$0x3]
    %p304 = scmp.ge.s32.totalorder %s288, 4
    %s305 = scalar_select %p304, 1, 0
    %v306 = vstv %s305
    %vm307 = vcmp.eq.s32.totalorder %v306, 1
    %v308 = vsel %vm307, %v84, 0.0
    %v310 = vlaneseq
    %v311 = vshrl.u32 %v310, 7
    %v312 = vsub.s32 0, %v311
    %v313 = vrot.slane %v308, %v312
    %v316 = vsel %vm116, %v303, 0
    %318 = vmatprep.subr.mxu0 0.0
    %319 = vmatpush1.msra.mxu0 0.0
    %320 = vmatprep.subr.mxu0 0.0
    %321 = vmatpush1.msra.mxu0 0.0
    %322 = vmatprep.subr.mxu0 0.0
    %323 = vmatpush1.msra.mxu0 0.0
    %324 = vmatprep.subr.mxu0 0.0
    %325 = vmatpush1.msra.mxu0 0.0
    %326 = vmatprep.subr.mxu0 0.0
    %327 = vmatpush1.msra.mxu0 0.0
    %328 = vmatprep.subr.mxu0 0.0
    %329 = vmatpush1.msra.mxu0 0.0
    %330 = vmatprep.subr.mxu0 0.0
    %331 = vmatpush1.msra.mxu0 0.0
    %332 = vmatprep.subr.mxu0 0.0
    %333 = vmatpush1.msra.mxu0 0.0
    %334 = vmatprep.subr.mxu0 0.0
    %335 = vmatpush1.msra.mxu0 0.0
    %336 = vmatprep.subr.mxu0 0.0
    %337 = vmatpush1.msra.mxu0 0.0
    %338 = vmatprep.subr.mxu0 0.0
    %339 = vmatpush1.msra.mxu0 0.0
    %340 = vmatprep.subr.mxu0 0.0
    %341 = vmatpush1.msra.mxu0 0.0
    %342 = vmatprep.subr.mxu0 0.0
    %343 = vmatpush1.msra.mxu0 %v83
    %344 = vmatprep.subr.mxu0 0.0
    %345 = vmatpush1.msra.mxu0 %v82
    %346 = vmatprep.subr.mxu0 0.0
    %347 = vmatpush1.msra.mxu0 %v81
    %348 = vmatprep.subr.mxu0 0.0
    %349 = vmatpush1.msra.mxu0 %v80
    %350 = vmatprep.subr.mxu0 0.0
    %351 = vmatpush2.msra.mxu0 0.0
    %352 = vmatprep.subr.mxu0 0.0
    %353 = vmatpush2.msra.mxu0 0.0
    %354 = vmatprep.subr.mxu0 0.0
    %355 = vmatpush2.msra.mxu0 0.0
    %356 = vmatprep.subr.mxu0 0.0
    %357 = vmatpush2.msra.mxu0 0.0
    %358 = vmatprep.subr.mxu0 0.0
    %359 = vmatpush2.msra.mxu0 0.0
    %360 = vmatprep.subr.mxu0 0.0
    %361 = vmatpush2.msra.mxu0 0.0
    %362 = vmatprep.subr.mxu0 0.0
    %363 = vmatpush2.msra.mxu0 0.0
    %364 = vmatprep.subr.mxu0 0.0
    %365 = vmatpush2.msra.mxu0 0.0
    %366 = vmatprep.subr.mxu0 0.0
    %367 = vmatpush2.msra.mxu0 0.0
    %368 = vmatprep.subr.mxu0 0.0
    %369 = vmatpush2.msra.mxu0 0.0
    %370 = vmatprep.subr.mxu0 0.0
    %371 = vmatpush2.msra.mxu0 0.0
    %372 = vmatprep.subr.mxu0 0.0
    %373 = vmatpush2.msra.mxu0 0.0
    %374 = vmatprep.subr.mxu0 0.0
    %375 = vmatpush2.msra.mxu0 0.0
    %376 = vmatprep.subr.mxu0 0.0
    %377 = vmatpush2.msra.mxu0 0.0
    %378 = vmatprep.subr.mxu0 0.0
    %379 = vmatpush2.msra.mxu0 0.0
    %380 = vmatprep.subr.mxu0 0.0
    %381 = vmatpush2.msra.mxu0 0.0
    %382 = vmatprep.mubr.f32.mxu0 0.0
    %383 = vmatmul.mubr.f32.gmra.mxu0 %v316
    %v384 = vpop.f32.mrf.mxu0
    %v385 = vadd.f32 %v313, %v384
    %v386 = vpop.f32.mrf.mxu0
    %387 = vdwg.mxu0
    %v389 = vsel %vm116, %v284, 0
    %391 = vmatprep.subr.mxu0 0.0
    %392 = vmatpush1.msra.mxu0 0.0
    %393 = vmatprep.subr.mxu0 0.0
    %394 = vmatpush1.msra.mxu0 0.0
    %395 = vmatprep.subr.mxu0 0.0
    %396 = vmatpush1.msra.mxu0 0.0
    %397 = vmatprep.subr.mxu0 0.0
    %398 = vmatpush1.msra.mxu0 0.0
    %399 = vmatprep.subr.mxu0 0.0
    %400 = vmatpush1.msra.mxu0 0.0
    %401 = vmatprep.subr.mxu0 0.0
    %402 = vmatpush1.msra.mxu0 0.0
    %403 = vmatprep.subr.mxu0 0.0
    %404 = vmatpush1.msra.mxu0 0.0
    %405 = vmatprep.subr.mxu0 0.0
    %406 = vmatpush1.msra.mxu0 0.0
    %407 = vmatprep.subr.mxu0 0.0
    %408 = vmatpush1.msra.mxu0 0.0
    %409 = vmatprep.subr.mxu0 0.0
    %410 = vmatpush1.msra.mxu0 0.0
    %411 = vmatprep.subr.mxu0 0.0
    %412 = vmatpush1.msra.mxu0 0.0
    %413 = vmatprep.subr.mxu0 0.0
    %414 = vmatpush1.msra.mxu0 0.0
    %415 = vmatprep.subr.mxu0 0.0
    %416 = vmatpush1.msra.mxu0 %v79
    %417 = vmatprep.subr.mxu0 0.0
    %418 = vmatpush1.msra.mxu0 %v78
    %419 = vmatprep.subr.mxu0 0.0
    %420 = vmatpush1.msra.mxu0 %v77
    %421 = vmatprep.subr.mxu0 0.0
    %422 = vmatpush1.msra.mxu0 %v76
    %423 = vmatprep.subr.mxu0 0.0
    %424 = vmatpush2.msra.mxu0 0.0
    %425 = vmatprep.subr.mxu0 0.0
    %426 = vmatpush2.msra.mxu0 0.0
    %427 = vmatprep.subr.mxu0 0.0
    %428 = vmatpush2.msra.mxu0 0.0
    %429 = vmatprep.subr.mxu0 0.0
    %430 = vmatpush2.msra.mxu0 0.0
    %431 = vmatprep.subr.mxu0 0.0
    %432 = vmatpush2.msra.mxu0 0.0
    %433 = vmatprep.subr.mxu0 0.0
    %434 = vmatpush2.msra.mxu0 0.0
    %435 = vmatprep.subr.mxu0 0.0
    %436 = vmatpush2.msra.mxu0 0.0
    %437 = vmatprep.subr.mxu0 0.0
    %438 = vmatpush2.msra.mxu0 0.0
    %439 = vmatprep.subr.mxu0 0.0
    %440 = vmatpush2.msra.mxu0 0.0
    %441 = vmatprep.subr.mxu0 0.0
    %442 = vmatpush2.msra.mxu0 0.0
    %443 = vmatprep.subr.mxu0 0.0
    %444 = vmatpush2.msra.mxu0 0.0
    %445 = vmatprep.subr.mxu0 0.0
    %446 = vmatpush2.msra.mxu0 0.0
    %447 = vmatprep.subr.mxu0 0.0
    %448 = vmatpush2.msra.mxu0 0.0
    %449 = vmatprep.subr.mxu0 0.0
    %450 = vmatpush2.msra.mxu0 0.0
    %451 = vmatprep.subr.mxu0 0.0
    %452 = vmatpush2.msra.mxu0 0.0
    %453 = vmatprep.subr.mxu0 0.0
    %454 = vmatpush2.msra.mxu0 0.0
    %455 = vmatprep.mubr.f32.mxu0 0.0
    %456 = vmatmul.mubr.f32.gmra.mxu0 %v389
    %v457 = vpop.f32.mrf.mxu0
    %v458 = vadd.f32 0.0, %v457
    %v459 = vpop.f32.mrf.mxu0
    %460 = vdwg.mxu0
    %s461 = scalar_lea.vmem [#allocation5], 2
    %v462 = vld [vmem:[%s461] sm:$0x3]
    %v463 = vadd.f32 %v462, %v458
    %v464 = vadd.f32 %v463, %v385
    %v465 = vsub.f32 %v464, %v274
    %v466 = vmul.f32 %v271, %v465
    %v467 = vadd.f32 %v466, %v274
    %v468 = vtanh.pop %v467
    %v469 = vsub.f32 %v468, %v284
    %v470 = vmul.f32 %v281, %v469
    %v471 = vadd.f32 %v470, %v284
    %472 = vst.msk [vmem:[%s302] sm:$0x3] %vm285, %v471
    %s473 = scalar_lea.vmem [#allocation11], 2
    %474 = vst.msk [vmem:[%s473] sm:$0x3] %vm285, %v471
    %s475 = sadd.s32 %s89, 2
    %p476 = scmp.lt.s32.totalorder %s475, 0
    %s477 = ssub.s32 0, %s475
    %s478 = scalar_select %p476, %s477, %s475
    %s479 = sand.u32 %s478, 3
    %s480 = ssub.s32 0, %s479
    %s481 = scalar_select %p476, %s480, %s479
    %p482 = scmp.ne.s32.totalorder %s481, 0
    %p483 = scmp.lt.s32.totalorder %s481, 0
    %p484 = pnand %p483, %p482
    %p485 = pneg %p484
    %s486 = sadd.s32 %s481, 4
    %s487 = scalar_select %p485, %s486, %s481
    %s488 = smul.u32 %s487, 2
    %s489 = scalar_lea.vmem [#allocation4], %s488
    %v490 = vld [vmem:[%s489] sm:$0x3]
    %p491 = scmp.ge.s32.totalorder %s475, 4
    %s492 = scalar_select %p491, 1, 0
    %v493 = vstv %s492
    %vm494 = vcmp.eq.s32.totalorder %v493, 1
    %v495 = vsel %vm494, %v84, 0.0
    %v497 = vlaneseq
    %v498 = vshrl.u32 %v497, 7
    %v499 = vsub.s32 0, %v498
    %v500 = vrot.slane %v495, %v499
    %v503 = vsel %vm116, %v490, 0
    %505 = vmatprep.subr.mxu0 0.0
    %506 = vmatpush1.msra.mxu0 0.0
    %507 = vmatprep.subr.mxu0 0.0
    %508 = vmatpush1.msra.mxu0 0.0
    %509 = vmatprep.subr.mxu0 0.0
    %510 = vmatpush1.msra.mxu0 0.0
    %511 = vmatprep.subr.mxu0 0.0
    %512 = vmatpush1.msra.mxu0 0.0
    %513 = vmatprep.subr.mxu0 0.0
    %514 = vmatpush1.msra.mxu0 0.0
    %515 = vmatprep.subr.mxu0 0.0
    %516 = vmatpush1.msra.mxu0 0.0
    %517 = vmatprep.subr.mxu0 0.0
    %518 = vmatpush1.msra.mxu0 0.0
    %519 = vmatprep.subr.mxu0 0.0
    %520 = vmatpush1.msra.mxu0 0.0
    %521 = vmatprep.subr.mxu0 0.0
    %522 = vmatpush1.msra.mxu0 0.0
    %523 = vmatprep.subr.mxu0 0.0
    %524 = vmatpush1.msra.mxu0 0.0
    %525 = vmatprep.subr.mxu0 0.0
    %526 = vmatpush1.msra.mxu0 0.0
    %527 = vmatprep.subr.mxu0 0.0
    %528 = vmatpush1.msra.mxu0 0.0
    %529 = vmatprep.subr.mxu0 0.0
    %530 = vmatpush1.msra.mxu0 %v83
    %531 = vmatprep.subr.mxu0 0.0
    %532 = vmatpush1.msra.mxu0 %v82
    %533 = vmatprep.subr.mxu0 0.0
    %534 = vmatpush1.msra.mxu0 %v81
    %535 = vmatprep.subr.mxu0 0.0
    %536 = vmatpush1.msra.mxu0 %v80
    %537 = vmatprep.subr.mxu0 0.0
    %538 = vmatpush2.msra.mxu0 0.0
    %539 = vmatprep.subr.mxu0 0.0
    %540 = vmatpush2.msra.mxu0 0.0
    %541 = vmatprep.subr.mxu0 0.0
    %542 = vmatpush2.msra.mxu0 0.0
    %543 = vmatprep.subr.mxu0 0.0
    %544 = vmatpush2.msra.mxu0 0.0
    %545 = vmatprep.subr.mxu0 0.0
    %546 = vmatpush2.msra.mxu0 0.0
    %547 = vmatprep.subr.mxu0 0.0
    %548 = vmatpush2.msra.mxu0 0.0
    %549 = vmatprep.subr.mxu0 0.0
    %550 = vmatpush2.msra.mxu0 0.0
    %551 = vmatprep.subr.mxu0 0.0
    %552 = vmatpush2.msra.mxu0 0.0
    %553 = vmatprep.subr.mxu0 0.0
    %554 = vmatpush2.msra.mxu0 0.0
    %555 = vmatprep.subr.mxu0 0.0
    %556 = vmatpush2.msra.mxu0 0.0
    %557 = vmatprep.subr.mxu0 0.0
    %558 = vmatpush2.msra.mxu0 0.0
    %559 = vmatprep.subr.mxu0 0.0
    %560 = vmatpush2.msra.mxu0 0.0
    %561 = vmatprep.subr.mxu0 0.0
    %562 = vmatpush2.msra.mxu0 0.0
    %563 = vmatprep.subr.mxu0 0.0
    %564 = vmatpush2.msra.mxu0 0.0
    %565 = vmatprep.subr.mxu0 0.0
    %566 = vmatpush2.msra.mxu0 0.0
    %567 = vmatprep.subr.mxu0 0.0
    %568 = vmatpush2.msra.mxu0 0.0
    %569 = vmatprep.mubr.f32.mxu0 0.0
    %570 = vmatmul.mubr.f32.gmra.mxu0 %v503
    %v571 = vpop.f32.mrf.mxu0
    %v572 = vadd.f32 %v500, %v571
    %v573 = vpop.f32.mrf.mxu0
    %574 = vdwg.mxu0
    %v576 = vsel %vm116, %v471, 0
    %578 = vmatprep.subr.mxu0 0.0
    %579 = vmatpush1.msra.mxu0 0.0
    %580 = vmatprep.subr.mxu0 0.0
    %581 = vmatpush1.msra.mxu0 0.0
    %582 = vmatprep.subr.mxu0 0.0
    %583 = vmatpush1.msra.mxu0 0.0
    %584 = vmatprep.subr.mxu0 0.0
    %585 = vmatpush1.msra.mxu0 0.0
    %586 = vmatprep.subr.mxu0 0.0
    %587 = vmatpush1.msra.mxu0 0.0
    %588 = vmatprep.subr.mxu0 0.0
    %589 = vmatpush1.msra.mxu0 0.0
    %590 = vmatprep.subr.mxu0 0.0
    %591 = vmatpush1.msra.mxu0 0.0
    %592 = vmatprep.subr.mxu0 0.0
    %593 = vmatpush1.msra.mxu0 0.0
    %594 = vmatprep.subr.mxu0 0.0
    %595 = vmatpush1.msra.mxu0 0.0
    %596 = vmatprep.subr.mxu0 0.0
    %597 = vmatpush1.msra.mxu0 0.0
    %598 = vmatprep.subr.mxu0 0.0
    %599 = vmatpush1.msra.mxu0 0.0
    %600 = vmatprep.subr.mxu0 0.0
    %601 = vmatpush1.msra.mxu0 0.0
    %602 = vmatprep.subr.mxu0 0.0
    %603 = vmatpush1.msra.mxu0 %v79
    %604 = vmatprep.subr.mxu0 0.0
    %605 = vmatpush1.msra.mxu0 %v78
    %606 = vmatprep.subr.mxu0 0.0
    %607 = vmatpush1.msra.mxu0 %v77
    %608 = vmatprep.subr.mxu0 0.0
    %609 = vmatpush1.msra.mxu0 %v76
    %610 = vmatprep.subr.mxu0 0.0
    %611 = vmatpush2.msra.mxu0 0.0
    %612 = vmatprep.subr.mxu0 0.0
    %613 = vmatpush2.msra.mxu0 0.0
    %614 = vmatprep.subr.mxu0 0.0
    %615 = vmatpush2.msra.mxu0 0.0
    %616 = vmatprep.subr.mxu0 0.0
    %617 = vmatpush2.msra.mxu0 0.0
    %618 = vmatprep.subr.mxu0 0.0
    %619 = vmatpush2.msra.mxu0 0.0
    %620 = vmatprep.subr.mxu0 0.0
    %621 = vmatpush2.msra.mxu0 0.0
    %622 = vmatprep.subr.mxu0 0.0
    %623 = vmatpush2.msra.mxu0 0.0
    %624 = vmatprep.subr.mxu0 0.0
    %625 = vmatpush2.msra.mxu0 0.0
    %626 = vmatprep.subr.mxu0 0.0
    %627 = vmatpush2.msra.mxu0 0.0
    %628 = vmatprep.subr.mxu0 0.0
    %629 = vmatpush2.msra.mxu0 0.0
    %630 = vmatprep.subr.mxu0 0.0
    %631 = vmatpush2.msra.mxu0 0.0
    %632 = vmatprep.subr.mxu0 0.0
    %633 = vmatpush2.msra.mxu0 0.0
    %634 = vmatprep.subr.mxu0 0.0
    %635 = vmatpush2.msra.mxu0 0.0
    %636 = vmatprep.subr.mxu0 0.0
    %637 = vmatpush2.msra.mxu0 0.0
    %638 = vmatprep.subr.mxu0 0.0
    %639 = vmatpush2.msra.mxu0 0.0
    %640 = vmatprep.subr.mxu0 0.0
    %641 = vmatpush2.msra.mxu0 0.0
    %642 = vmatprep.mubr.f32.mxu0 0.0
    %643 = vmatmul.mubr.f32.gmra.mxu0 %v576
    %v644 = vpop.f32.mrf.mxu0
    %v645 = vadd.f32 0.0, %v644
    %v646 = vpop.f32.mrf.mxu0
    %647 = vdwg.mxu0
    %s648 = scalar_lea.vmem [#allocation5], 4
    %v649 = vld [vmem:[%s648] sm:$0x3]
    %v650 = vadd.f32 %v649, %v645
    %v651 = vadd.f32 %v650, %v572
    %v652 = vsub.f32 %v651, %v467
    %v653 = vmul.f32 %v271, %v652
    %v654 = vadd.f32 %v653, %v467
    %v655 = vtanh.pop %v654
    %v656 = vsub.f32 %v655, %v471
    %v657 = vmul.f32 %v281, %v656
    %v658 = vadd.f32 %v657, %v471
    %659 = vst.msk [vmem:[%s489] sm:$0x3] %vm285, %v658
    %s660 = scalar_lea.vmem [#allocation11], 4
    %661 = vst.msk [vmem:[%s660] sm:$0x3] %vm285, %v658
    %s662 = sadd.s32 %s89, 3
    %p663 = scmp.lt.s32.totalorder %s662, 0
    %s664 = ssub.s32 0, %s662
    %s665 = scalar_select %p663, %s664, %s662
    %s666 = sand.u32 %s665, 3
    %s667 = ssub.s32 0, %s666
    %s668 = scalar_select %p663, %s667, %s666
    %p669 = scmp.ne.s32.totalorder %s668, 0
    %p670 = scmp.lt.s32.totalorder %s668, 0
    %p671 = pnand %p670, %p669
    %p672 = pneg %p671
    %s673 = sadd.s32 %s668, 4
    %s674 = scalar_select %p672, %s673, %s668
    %s675 = smul.u32 %s674, 2
    %s676 = scalar_lea.vmem [#allocation4], %s675
    %v677 = vld [vmem:[%s676] sm:$0x3]
    %p678 = scmp.ge.s32.totalorder %s662, 4
    %s679 = scalar_select %p678, 1, 0
    %v680 = vstv %s679
    %vm681 = vcmp.eq.s32.totalorder %v680, 1
    %v682 = vsel %vm681, %v84, 0.0
    %v684 = vlaneseq
    %v685 = vshrl.u32 %v684, 7
    %v686 = vsub.s32 0, %v685
    %v687 = vrot.slane %v682, %v686
    %v690 = vsel %vm116, %v677, 0
    %692 = vmatprep.subr.mxu0 0.0
    %693 = vmatpush1.msra.mxu0 0.0
    %694 = vmatprep.subr.mxu0 0.0
    %695 = vmatpush1.msra.mxu0 0.0
    %696 = vmatprep.subr.mxu0 0.0
    %697 = vmatpush1.msra.mxu0 0.0
    %698 = vmatprep.subr.mxu0 0.0
    %699 = vmatpush1.msra.mxu0 0.0
    %700 = vmatprep.subr.mxu0 0.0
    %701 = vmatpush1.msra.mxu0 0.0
    %702 = vmatprep.subr.mxu0 0.0
    %703 = vmatpush1.msra.mxu0 0.0
    %704 = vmatprep.subr.mxu0 0.0
    %705 = vmatpush1.msra.mxu0 0.0
    %706 = vmatprep.subr.mxu0 0.0
    %707 = vmatpush1.msra.mxu0 0.0
    %708 = vmatprep.subr.mxu0 0.0
    %709 = vmatpush1.msra.mxu0 0.0
    %710 = vmatprep.subr.mxu0 0.0
    %711 = vmatpush1.msra.mxu0 0.0
    %712 = vmatprep.subr.mxu0 0.0
    %713 = vmatpush1.msra.mxu0 0.0
    %714 = vmatprep.subr.mxu0 0.0
    %715 = vmatpush1.msra.mxu0 0.0
    %716 = vmatprep.subr.mxu0 0.0
    %717 = vmatpush1.msra.mxu0 %v83
    %718 = vmatprep.subr.mxu0 0.0
    %719 = vmatpush1.msra.mxu0 %v82
    %720 = vmatprep.subr.mxu0 0.0
    %721 = vmatpush1.msra.mxu0 %v81
    %722 = vmatprep.subr.mxu0 0.0
    %723 = vmatpush1.msra.mxu0 %v80
    %724 = vmatprep.subr.mxu0 0.0
    %725 = vmatpush2.msra.mxu0 0.0
    %726 = vmatprep.subr.mxu0 0.0
    %727 = vmatpush2.msra.mxu0 0.0
    %728 = vmatprep.subr.mxu0 0.0
    %729 = vmatpush2.msra.mxu0 0.0
    %730 = vmatprep.subr.mxu0 0.0
    %731 = vmatpush2.msra.mxu0 0.0
    %732 = vmatprep.subr.mxu0 0.0
    %733 = vmatpush2.msra.mxu0 0.0
    %734 = vmatprep.subr.mxu0 0.0
    %735 = vmatpush2.msra.mxu0 0.0
    %736 = vmatprep.subr.mxu0 0.0
    %737 = vmatpush2.msra.mxu0 0.0
    %738 = vmatprep.subr.mxu0 0.0
    %739 = vmatpush2.msra.mxu0 0.0
    %740 = vmatprep.subr.mxu0 0.0
    %741 = vmatpush2.msra.mxu0 0.0
    %742 = vmatprep.subr.mxu0 0.0
    %743 = vmatpush2.msra.mxu0 0.0
    %744 = vmatprep.subr.mxu0 0.0
    %745 = vmatpush2.msra.mxu0 0.0
    %746 = vmatprep.subr.mxu0 0.0
    %747 = vmatpush2.msra.mxu0 0.0
    %748 = vmatprep.subr.mxu0 0.0
    %749 = vmatpush2.msra.mxu0 0.0
    %750 = vmatprep.subr.mxu0 0.0
    %751 = vmatpush2.msra.mxu0 0.0
    %752 = vmatprep.subr.mxu0 0.0
    %753 = vmatpush2.msra.mxu0 0.0
    %754 = vmatprep.subr.mxu0 0.0
    %755 = vmatpush2.msra.mxu0 0.0
    %756 = vmatprep.mubr.f32.mxu0 0.0
    %757 = vmatmul.mubr.f32.gmra.mxu0 %v690
    %v758 = vpop.f32.mrf.mxu0
    %v759 = vadd.f32 %v687, %v758
    %v760 = vpop.f32.mrf.mxu0
    %761 = vdwg.mxu0
    %v763 = vsel %vm116, %v658, 0
    %765 = vmatprep.subr.mxu0 0.0
    %766 = vmatpush1.msra.mxu0 0.0
    %767 = vmatprep.subr.mxu0 0.0
    %768 = vmatpush1.msra.mxu0 0.0
    %769 = vmatprep.subr.mxu0 0.0
    %770 = vmatpush1.msra.mxu0 0.0
    %771 = vmatprep.subr.mxu0 0.0
    %772 = vmatpush1.msra.mxu0 0.0
    %773 = vmatprep.subr.mxu0 0.0
    %774 = vmatpush1.msra.mxu0 0.0
    %775 = vmatprep.subr.mxu0 0.0
    %776 = vmatpush1.msra.mxu0 0.0
    %777 = vmatprep.subr.mxu0 0.0
    %778 = vmatpush1.msra.mxu0 0.0
    %779 = vmatprep.subr.mxu0 0.0
    %780 = vmatpush1.msra.mxu0 0.0
    %781 = vmatprep.subr.mxu0 0.0
    %782 = vmatpush1.msra.mxu0 0.0
    %783 = vmatprep.subr.mxu0 0.0
    %784 = vmatpush1.msra.mxu0 0.0
    %785 = vmatprep.subr.mxu0 0.0
    %786 = vmatpush1.msra.mxu0 0.0
    %787 = vmatprep.subr.mxu0 0.0
    %788 = vmatpush1.msra.mxu0 0.0
    %789 = vmatprep.subr.mxu0 0.0
    %790 = vmatpush1.msra.mxu0 %v79
    %791 = vmatprep.subr.mxu0 0.0
    %792 = vmatpush1.msra.mxu0 %v78
    %793 = vmatprep.subr.mxu0 0.0
    %794 = vmatpush1.msra.mxu0 %v77
    %795 = vmatprep.subr.mxu0 0.0
    %796 = vmatpush1.msra.mxu0 %v76
    %797 = vmatprep.subr.mxu0 0.0
    %798 = vmatpush2.msra.mxu0 0.0
    %799 = vmatprep.subr.mxu0 0.0
    %800 = vmatpush2.msra.mxu0 0.0
    %801 = vmatprep.subr.mxu0 0.0
    %802 = vmatpush2.msra.mxu0 0.0
    %803 = vmatprep.subr.mxu0 0.0
    %804 = vmatpush2.msra.mxu0 0.0
    %805 = vmatprep.subr.mxu0 0.0
    %806 = vmatpush2.msra.mxu0 0.0
    %807 = vmatprep.subr.mxu0 0.0
    %808 = vmatpush2.msra.mxu0 0.0
    %809 = vmatprep.subr.mxu0 0.0
    %810 = vmatpush2.msra.mxu0 0.0
    %811 = vmatprep.subr.mxu0 0.0
    %812 = vmatpush2.msra.mxu0 0.0
    %813 = vmatprep.subr.mxu0 0.0
    %814 = vmatpush2.msra.mxu0 0.0
    %815 = vmatprep.subr.mxu0 0.0
    %816 = vmatpush2.msra.mxu0 0.0
    %817 = vmatprep.subr.mxu0 0.0
    %818 = vmatpush2.msra.mxu0 0.0
    %819 = vmatprep.subr.mxu0 0.0
    %820 = vmatpush2.msra.mxu0 0.0
    %821 = vmatprep.subr.mxu0 0.0
    %822 = vmatpush2.msra.mxu0 0.0
    %823 = vmatprep.subr.mxu0 0.0
    %824 = vmatpush2.msra.mxu0 0.0
    %825 = vmatprep.subr.mxu0 0.0
    %826 = vmatpush2.msra.mxu0 0.0
    %827 = vmatprep.subr.mxu0 0.0
    %828 = vmatpush2.msra.mxu0 0.0
    %829 = vmatprep.mubr.f32.mxu0 0.0
    %830 = vmatmul.mubr.f32.gmra.mxu0 %v763
    %v831 = vpop.f32.mrf.mxu0
    %v832 = vadd.f32 0.0, %v831
    %v833 = vpop.f32.mrf.mxu0
    %834 = vdwg.mxu0
    %s835 = scalar_lea.vmem [#allocation5], 6
    %v836 = vld [vmem:[%s835] sm:$0x3]
    %v837 = vadd.f32 %v836, %v832
    %v838 = vadd.f32 %v837, %v759
    %v839 = vsub.f32 %v838, %v654
    %v840 = vmul.f32 %v271, %v839
    %v841 = vadd.f32 %v840, %v654
    %v842 = vtanh.pop %v841
    %v843 = vsub.f32 %v842, %v658
    %v844 = vmul.f32 %v281, %v843
    %v845 = vadd.f32 %v844, %v658
    %846 = vst.msk [vmem:[%s676] sm:$0x3] %vm285, %v845
    %s847 = scalar_lea.vmem [#allocation11], 6
    %848 = vst.msk [vmem:[%s847] sm:$0x3] %vm285, %v845
    %s849 = sadd.s32 %s89, 4
    %p850 = scmp.lt.s32.totalorder %s849, 0
    %s851 = ssub.s32 0, %s849
    %s852 = scalar_select %p850, %s851, %s849
    %s853 = sand.u32 %s852, 3
    %s854 = ssub.s32 0, %s853
    %s855 = scalar_select %p850, %s854, %s853
    %p856 = scmp.ne.s32.totalorder %s855, 0
    %p857 = scmp.lt.s32.totalorder %s855, 0
    %p858 = pnand %p857, %p856
    %p859 = pneg %p858
    %s860 = sadd.s32 %s855, 4
    %s861 = scalar_select %p859, %s860, %s855
    %s862 = smul.u32 %s861, 2
    %s863 = scalar_lea.vmem [#allocation4], %s862
    %v864 = vld [vmem:[%s863] sm:$0x3]
    %p865 = scmp.ge.s32.totalorder %s849, 4
    %s866 = scalar_select %p865, 1, 0
    %v867 = vstv %s866
    %vm868 = vcmp.eq.s32.totalorder %v867, 1
    %v869 = vsel %vm868, %v84, 0.0
    %v871 = vlaneseq
    %v872 = vshrl.u32 %v871, 7
    %v873 = vsub.s32 0, %v872
    %v874 = vrot.slane %v869, %v873
    %v877 = vsel %vm116, %v864, 0
    %879 = vmatprep.subr.mxu0 0.0
    %880 = vmatpush1.msra.mxu0 0.0
    %881 = vmatprep.subr.mxu0 0.0
    %882 = vmatpush1.msra.mxu0 0.0
    %883 = vmatprep.subr.mxu0 0.0
    %884 = vmatpush1.msra.mxu0 0.0
    %885 = vmatprep.subr.mxu0 0.0
    %886 = vmatpush1.msra.mxu0 0.0
    %887 = vmatprep.subr.mxu0 0.0
    %888 = vmatpush1.msra.mxu0 0.0
    %889 = vmatprep.subr.mxu0 0.0
    %890 = vmatpush1.msra.mxu0 0.0
    %891 = vmatprep.subr.mxu0 0.0
    %892 = vmatpush1.msra.mxu0 0.0
    %893 = vmatprep.subr.mxu0 0.0
    %894 = vmatpush1.msra.mxu0 0.0
    %895 = vmatprep.subr.mxu0 0.0
    %896 = vmatpush1.msra.mxu0 0.0
    %897 = vmatprep.subr.mxu0 0.0
    %898 = vmatpush1.msra.mxu0 0.0
    %899 = vmatprep.subr.mxu0 0.0
    %900 = vmatpush1.msra.mxu0 0.0
    %901 = vmatprep.subr.mxu0 0.0
    %902 = vmatpush1.msra.mxu0 0.0
    %903 = vmatprep.subr.mxu0 0.0
    %904 = vmatpush1.msra.mxu0 %v83
    %905 = vmatprep.subr.mxu0 0.0
    %906 = vmatpush1.msra.mxu0 %v82
    %907 = vmatprep.subr.mxu0 0.0
    %908 = vmatpush1.msra.mxu0 %v81
    %909 = vmatprep.subr.mxu0 0.0
    %910 = vmatpush1.msra.mxu0 %v80
    %911 = vmatprep.subr.mxu0 0.0
    %912 = vmatpush2.msra.mxu0 0.0
    %913 = vmatprep.subr.mxu0 0.0
    %914 = vmatpush2.msra.mxu0 0.0
    %915 = vmatprep.subr.mxu0 0.0
    %916 = vmatpush2.msra.mxu0 0.0
    %917 = vmatprep.subr.mxu0 0.0
    %918 = vmatpush2.msra.mxu0 0.0
    %919 = vmatprep.subr.mxu0 0.0
    %920 = vmatpush2.msra.mxu0 0.0
    %921 = vmatprep.subr.mxu0 0.0
    %922 = vmatpush2.msra.mxu0 0.0
    %923 = vmatprep.subr.mxu0 0.0
    %924 = vmatpush2.msra.mxu0 0.0
    %925 = vmatprep.subr.mxu0 0.0
    %926 = vmatpush2.msra.mxu0 0.0
    %927 = vmatprep.subr.mxu0 0.0
    %928 = vmatpush2.msra.mxu0 0.0
    %929 = vmatprep.subr.mxu0 0.0
    %930 = vmatpush2.msra.mxu0 0.0
    %931 = vmatprep.subr.mxu0 0.0
    %932 = vmatpush2.msra.mxu0 0.0
    %933 = vmatprep.subr.mxu0 0.0
    %934 = vmatpush2.msra.mxu0 0.0
    %935 = vmatprep.subr.mxu0 0.0
    %936 = vmatpush2.msra.mxu0 0.0
    %937 = vmatprep.subr.mxu0 0.0
    %938 = vmatpush2.msra.mxu0 0.0
    %939 = vmatprep.subr.mxu0 0.0
    %940 = vmatpush2.msra.mxu0 0.0
    %941 = vmatprep.subr.mxu0 0.0
    %942 = vmatpush2.msra.mxu0 0.0
    %943 = vmatprep.mubr.f32.mxu0 0.0
    %944 = vmatmul.mubr.f32.gmra.mxu0 %v877
    %v945 = vpop.f32.mrf.mxu0
    %v946 = vadd.f32 %v874, %v945
    %v947 = vpop.f32.mrf.mxu0
    %948 = vdwg.mxu0
    %v950 = vsel %vm116, %v845, 0
    %952 = vmatprep.subr.mxu0 0.0
    %953 = vmatpush1.msra.mxu0 0.0
    %954 = vmatprep.subr.mxu0 0.0
    %955 = vmatpush1.msra.mxu0 0.0
    %956 = vmatprep.subr.mxu0 0.0
    %957 = vmatpush1.msra.mxu0 0.0
    %958 = vmatprep.subr.mxu0 0.0
    %959 = vmatpush1.msra.mxu0 0.0
    %960 = vmatprep.subr.mxu0 0.0
    %961 = vmatpush1.msra.mxu0 0.0
    %962 = vmatprep.subr.mxu0 0.0
    %963 = vmatpush1.msra.mxu0 0.0
    %964 = vmatprep.subr.mxu0 0.0
    %965 = vmatpush1.msra.mxu0 0.0
    %966 = vmatprep.subr.mxu0 0.0
    %967 = vmatpush1.msra.mxu0 0.0
    %968 = vmatprep.subr.mxu0 0.0
    %969 = vmatpush1.msra.mxu0 0.0
    %970 = vmatprep.subr.mxu0 0.0
    %971 = vmatpush1.msra.mxu0 0.0
    %972 = vmatprep.subr.mxu0 0.0
    %973 = vmatpush1.msra.mxu0 0.0
    %974 = vmatprep.subr.mxu0 0.0
    %975 = vmatpush1.msra.mxu0 0.0
    %976 = vmatprep.subr.mxu0 0.0
    %977 = vmatpush1.msra.mxu0 %v79
    %978 = vmatprep.subr.mxu0 0.0
    %979 = vmatpush1.msra.mxu0 %v78
    %980 = vmatprep.subr.mxu0 0.0
    %981 = vmatpush1.msra.mxu0 %v77
    %982 = vmatprep.subr.mxu0 0.0
    %983 = vmatpush1.msra.mxu0 %v76
    %984 = vmatprep.subr.mxu0 0.0
    %985 = vmatpush2.msra.mxu0 0.0
    %986 = vmatprep.subr.mxu0 0.0
    %987 = vmatpush2.msra.mxu0 0.0
    %988 = vmatprep.subr.mxu0 0.0
    %989 = vmatpush2.msra.mxu0 0.0
    %990 = vmatprep.subr.mxu0 0.0
    %991 = vmatpush2.msra.mxu0 0.0
    %992 = vmatprep.subr.mxu0 0.0
    %993 = vmatpush2.msra.mxu0 0.0
    %994 = vmatprep.subr.mxu0 0.0
    %995 = vmatpush2.msra.mxu0 0.0
    %996 = vmatprep.subr.mxu0 0.0
    %997 = vmatpush2.msra.mxu0 0.0
    %998 = vmatprep.subr.mxu0 0.0
    %999 = vmatpush2.msra.mxu0 0.0
    %1000 = vmatprep.subr.mxu0 0.0
    %1001 = vmatpush2.msra.mxu0 0.0
    %1002 = vmatprep.subr.mxu0 0.0
    %1003 = vmatpush2.msra.mxu0 0.0
    %1004 = vmatprep.subr.mxu0 0.0
    %1005 = vmatpush2.msra.mxu0 0.0
    %1006 = vmatprep.subr.mxu0 0.0
    %1007 = vmatpush2.msra.mxu0 0.0
    %1008 = vmatprep.subr.mxu0 0.0
    %1009 = vmatpush2.msra.mxu0 0.0
    %1010 = vmatprep.subr.mxu0 0.0
    %1011 = vmatpush2.msra.mxu0 0.0
    %1012 = vmatprep.subr.mxu0 0.0
    %1013 = vmatpush2.msra.mxu0 0.0
    %1014 = vmatprep.subr.mxu0 0.0
    %1015 = vmatpush2.msra.mxu0 0.0
    %1016 = vmatprep.mubr.f32.mxu0 0.0
    %1017 = vmatmul.mubr.f32.gmra.mxu0 %v950
    %v1018 = vpop.f32.mrf.mxu0
    %v1019 = vadd.f32 0.0, %v1018
    %v1020 = vpop.f32.mrf.mxu0
    %1021 = vdwg.mxu0
    %s1022 = scalar_lea.vmem [#allocation5], 8
    %v1023 = vld [vmem:[%s1022] sm:$0x3]
    %v1024 = vadd.f32 %v1023, %v1019
    %v1025 = vadd.f32 %v1024, %v946
    %v1026 = vsub.f32 %v1025, %v841
    %v1027 = vmul.f32 %v271, %v1026
    %v1028 = vadd.f32 %v1027, %v841
    %v1029 = vtanh.pop %v1028
    %v1030 = vsub.f32 %v1029, %v845
    %v1031 = vmul.f32 %v281, %v1030
    %v1032 = vadd.f32 %v1031, %v845
    %1033 = vst.msk [vmem:[%s863] sm:$0x3] %vm285, %v1032
    %s1034 = scalar_lea.vmem [#allocation11], 8
    %1035 = vst.msk [vmem:[%s1034] sm:$0x3] %vm285, %v1032
    %s1036 = sadd.s32 %s89, 5
    %p1037 = scmp.lt.s32.totalorder %s1036, 0
    %s1038 = ssub.s32 0, %s1036
    %s1039 = scalar_select %p1037, %s1038, %s1036
    %s1040 = sand.u32 %s1039, 3
    %s1041 = ssub.s32 0, %s1040
    %s1042 = scalar_select %p1037, %s1041, %s1040
    %p1043 = scmp.ne.s32.totalorder %s1042, 0
    %p1044 = scmp.lt.s32.totalorder %s1042, 0
    %p1045 = pnand %p1044, %p1043
    %p1046 = pneg %p1045
    %s1047 = sadd.s32 %s1042, 4
    %s1048 = scalar_select %p1046, %s1047, %s1042
    %s1049 = smul.u32 %s1048, 2
    %s1050 = scalar_lea.vmem [#allocation4], %s1049
    %v1051 = vld [vmem:[%s1050] sm:$0x3]
    %p1052 = scmp.ge.s32.totalorder %s1036, 4
    %s1053 = scalar_select %p1052, 1, 0
    %v1054 = vstv %s1053
    %vm1055 = vcmp.eq.s32.totalorder %v1054, 1
    %v1056 = vsel %vm1055, %v84, 0.0
    %v1058 = vlaneseq
    %v1059 = vshrl.u32 %v1058, 7
    %v1060 = vsub.s32 0, %v1059
    %v1061 = vrot.slane %v1056, %v1060
    %v1064 = vsel %vm116, %v1051, 0
    %1066 = vmatprep.subr.mxu0 0.0
    %1067 = vmatpush1.msra.mxu0 0.0
    %1068 = vmatprep.subr.mxu0 0.0
    %1069 = vmatpush1.msra.mxu0 0.0
    %1070 = vmatprep.subr.mxu0 0.0
    %1071 = vmatpush1.msra.mxu0 0.0
    %1072 = vmatprep.subr.mxu0 0.0
    %1073 = vmatpush1.msra.mxu0 0.0
    %1074 = vmatprep.subr.mxu0 0.0
    %1075 = vmatpush1.msra.mxu0 0.0
    %1076 = vmatprep.subr.mxu0 0.0
    %1077 = vmatpush1.msra.mxu0 0.0
    %1078 = vmatprep.subr.mxu0 0.0
    %1079 = vmatpush1.msra.mxu0 0.0
    %1080 = vmatprep.subr.mxu0 0.0
    %1081 = vmatpush1.msra.mxu0 0.0
    %1082 = vmatprep.subr.mxu0 0.0
    %1083 = vmatpush1.msra.mxu0 0.0
    %1084 = vmatprep.subr.mxu0 0.0
    %1085 = vmatpush1.msra.mxu0 0.0
    %1086 = vmatprep.subr.mxu0 0.0
    %1087 = vmatpush1.msra.mxu0 0.0
    %1088 = vmatprep.subr.mxu0 0.0
    %1089 = vmatpush1.msra.mxu0 0.0
    %1090 = vmatprep.subr.mxu0 0.0
    %1091 = vmatpush1.msra.mxu0 %v83
    %1092 = vmatprep.subr.mxu0 0.0
    %1093 = vmatpush1.msra.mxu0 %v82
    %1094 = vmatprep.subr.mxu0 0.0
    %1095 = vmatpush1.msra.mxu0 %v81
    %1096 = vmatprep.subr.mxu0 0.0
    %1097 = vmatpush1.msra.mxu0 %v80
    %1098 = vmatprep.subr.mxu0 0.0
    %1099 = vmatpush2.msra.mxu0 0.0
    %1100 = vmatprep.subr.mxu0 0.0
    %1101 = vmatpush2.msra.mxu0 0.0
    %1102 = vmatprep.subr.mxu0 0.0
    %1103 = vmatpush2.msra.mxu0 0.0
    %1104 = vmatprep.subr.mxu0 0.0
    %1105 = vmatpush2.msra.mxu0 0.0
    %1106 = vmatprep.subr.mxu0 0.0
    %1107 = vmatpush2.msra.mxu0 0.0
    %1108 = vmatprep.subr.mxu0 0.0
    %1109 = vmatpush2.msra.mxu0 0.0
    %1110 = vmatprep.subr.mxu0 0.0
    %1111 = vmatpush2.msra.mxu0 0.0
    %1112 = vmatprep.subr.mxu0 0.0
    %1113 = vmatpush2.msra.mxu0 0.0
    %1114 = vmatprep.subr.mxu0 0.0
    %1115 = vmatpush2.msra.mxu0 0.0
    %1116 = vmatprep.subr.mxu0 0.0
    %1117 = vmatpush2.msra.mxu0 0.0
    %1118 = vmatprep.subr.mxu0 0.0
    %1119 = vmatpush2.msra.mxu0 0.0
    %1120 = vmatprep.subr.mxu0 0.0
    %1121 = vmatpush2.msra.mxu0 0.0
    %1122 = vmatprep.subr.mxu0 0.0
    %1123 = vmatpush2.msra.mxu0 0.0
    %1124 = vmatprep.subr.mxu0 0.0
    %1125 = vmatpush2.msra.mxu0 0.0
    %1126 = vmatprep.subr.mxu0 0.0
    %1127 = vmatpush2.msra.mxu0 0.0
    %1128 = vmatprep.subr.mxu0 0.0
    %1129 = vmatpush2.msra.mxu0 0.0
    %1130 = vmatprep.mubr.f32.mxu0 0.0
    %1131 = vmatmul.mubr.f32.gmra.mxu0 %v1064
    %v1132 = vpop.f32.mrf.mxu0
    %v1133 = vadd.f32 %v1061, %v1132
    %v1134 = vpop.f32.mrf.mxu0
    %1135 = vdwg.mxu0
    %v1137 = vsel %vm116, %v1032, 0
    %1139 = vmatprep.subr.mxu0 0.0
    %1140 = vmatpush1.msra.mxu0 0.0
    %1141 = vmatprep.subr.mxu0 0.0
    %1142 = vmatpush1.msra.mxu0 0.0
    %1143 = vmatprep.subr.mxu0 0.0
    %1144 = vmatpush1.msra.mxu0 0.0
    %1145 = vmatprep.subr.mxu0 0.0
    %1146 = vmatpush1.msra.mxu0 0.0
    %1147 = vmatprep.subr.mxu0 0.0
    %1148 = vmatpush1.msra.mxu0 0.0
    %1149 = vmatprep.subr.mxu0 0.0
    %1150 = vmatpush1.msra.mxu0 0.0
    %1151 = vmatprep.subr.mxu0 0.0
    %1152 = vmatpush1.msra.mxu0 0.0
    %1153 = vmatprep.subr.mxu0 0.0
    %1154 = vmatpush1.msra.mxu0 0.0
    %1155 = vmatprep.subr.mxu0 0.0
    %1156 = vmatpush1.msra.mxu0 0.0
    %1157 = vmatprep.subr.mxu0 0.0
    %1158 = vmatpush1.msra.mxu0 0.0
    %1159 = vmatprep.subr.mxu0 0.0
    %1160 = vmatpush1.msra.mxu0 0.0
    %1161 = vmatprep.subr.mxu0 0.0
    %1162 = vmatpush1.msra.mxu0 0.0
    %1163 = vmatprep.subr.mxu0 0.0
    %1164 = vmatpush1.msra.mxu0 %v79
    %1165 = vmatprep.subr.mxu0 0.0
    %1166 = vmatpush1.msra.mxu0 %v78
    %1167 = vmatprep.subr.mxu0 0.0
    %1168 = vmatpush1.msra.mxu0 %v77
    %1169 = vmatprep.subr.mxu0 0.0
    %1170 = vmatpush1.msra.mxu0 %v76
    %1171 = vmatprep.subr.mxu0 0.0
    %1172 = vmatpush2.msra.mxu0 0.0
    %1173 = vmatprep.subr.mxu0 0.0
    %1174 = vmatpush2.msra.mxu0 0.0
    %1175 = vmatprep.subr.mxu0 0.0
    %1176 = vmatpush2.msra.mxu0 0.0
    %1177 = vmatprep.subr.mxu0 0.0
    %1178 = vmatpush2.msra.mxu0 0.0
    %1179 = vmatprep.subr.mxu0 0.0
    %1180 = vmatpush2.msra.mxu0 0.0
    %1181 = vmatprep.subr.mxu0 0.0
    %1182 = vmatpush2.msra.mxu0 0.0
    %1183 = vmatprep.subr.mxu0 0.0
    %1184 = vmatpush2.msra.mxu0 0.0
    %1185 = vmatprep.subr.mxu0 0.0
    %1186 = vmatpush2.msra.mxu0 0.0
    %1187 = vmatprep.subr.mxu0 0.0
    %1188 = vmatpush2.msra.mxu0 0.0
    %1189 = vmatprep.subr.mxu0 0.0
    %1190 = vmatpush2.msra.mxu0 0.0
    %1191 = vmatprep.subr.mxu0 0.0
    %1192 = vmatpush2.msra.mxu0 0.0
    %1193 = vmatprep.subr.mxu0 0.0
    %1194 = vmatpush2.msra.mxu0 0.0
    %1195 = vmatprep.subr.mxu0 0.0
    %1196 = vmatpush2.msra.mxu0 0.0
    %1197 = vmatprep.subr.mxu0 0.0
    %1198 = vmatpush2.msra.mxu0 0.0
    %1199 = vmatprep.subr.mxu0 0.0
    %1200 = vmatpush2.msra.mxu0 0.0
    %1201 = vmatprep.subr.mxu0 0.0
    %1202 = vmatpush2.msra.mxu0 0.0
    %1203 = vmatprep.mubr.f32.mxu0 0.0
    %1204 = vmatmul.mubr.f32.gmra.mxu0 %v1137
    %v1205 = vpop.f32.mrf.mxu0
    %v1206 = vadd.f32 0.0, %v1205
    %v1207 = vpop.f32.mrf.mxu0
    %1208 = vdwg.mxu0
    %s1209 = scalar_lea.vmem [#allocation5], 10
    %v1210 = vld [vmem:[%s1209] sm:$0x3]
    %v1211 = vadd.f32 %v1210, %v1206
    %v1212 = vadd.f32 %v1211, %v1133
    %v1213 = vsub.f32 %v1212, %v1028
    %v1214 = vmul.f32 %v271, %v1213
    %v1215 = vadd.f32 %v1214, %v1028
    %v1216 = vtanh.pop %v1215
    %v1217 = vsub.f32 %v1216, %v1032
    %v1218 = vmul.f32 %v281, %v1217
    %v1219 = vadd.f32 %v1218, %v1032
    %1220 = vst.msk [vmem:[%s1050] sm:$0x3] %vm285, %v1219
    %s1221 = scalar_lea.vmem [#allocation11], 10
    %1222 = vst.msk [vmem:[%s1221] sm:$0x3] %vm285, %v1219
    %s1223 = sadd.s32 %s89, 6
    %p1224 = scmp.lt.s32.totalorder %s1223, 0
    %s1225 = ssub.s32 0, %s1223
    %s1226 = scalar_select %p1224, %s1225, %s1223
    %s1227 = sand.u32 %s1226, 3
    %s1228 = ssub.s32 0, %s1227
    %s1229 = scalar_select %p1224, %s1228, %s1227
    %p1230 = scmp.ne.s32.totalorder %s1229, 0
    %p1231 = scmp.lt.s32.totalorder %s1229, 0
    %p1232 = pnand %p1231, %p1230
    %p1233 = pneg %p1232
    %s1234 = sadd.s32 %s1229, 4
    %s1235 = scalar_select %p1233, %s1234, %s1229
    %s1236 = smul.u32 %s1235, 2
    %s1237 = scalar_lea.vmem [#allocation4], %s1236
    %v1238 = vld [vmem:[%s1237] sm:$0x3]
    %p1239 = scmp.ge.s32.totalorder %s1223, 4
    %s1240 = scalar_select %p1239, 1, 0
    %v1241 = vstv %s1240
    %vm1242 = vcmp.eq.s32.totalorder %v1241, 1
    %v1243 = vsel %vm1242, %v84, 0.0
    %v1245 = vlaneseq
    %v1246 = vshrl.u32 %v1245, 7
    %v1247 = vsub.s32 0, %v1246
    %v1248 = vrot.slane %v1243, %v1247
    %v1251 = vsel %vm116, %v1238, 0
    %1253 = vmatprep.subr.mxu0 0.0
    %1254 = vmatpush1.msra.mxu0 0.0
    %1255 = vmatprep.subr.mxu0 0.0
    %1256 = vmatpush1.msra.mxu0 0.0
    %1257 = vmatprep.subr.mxu0 0.0
    %1258 = vmatpush1.msra.mxu0 0.0
    %1259 = vmatprep.subr.mxu0 0.0
    %1260 = vmatpush1.msra.mxu0 0.0
    %1261 = vmatprep.subr.mxu0 0.0
    %1262 = vmatpush1.msra.mxu0 0.0
    %1263 = vmatprep.subr.mxu0 0.0
    %1264 = vmatpush1.msra.mxu0 0.0
    %1265 = vmatprep.subr.mxu0 0.0
    %1266 = vmatpush1.msra.mxu0 0.0
    %1267 = vmatprep.subr.mxu0 0.0
    %1268 = vmatpush1.msra.mxu0 0.0
    %1269 = vmatprep.subr.mxu0 0.0
    %1270 = vmatpush1.msra.mxu0 0.0
    %1271 = vmatprep.subr.mxu0 0.0
    %1272 = vmatpush1.msra.mxu0 0.0
    %1273 = vmatprep.subr.mxu0 0.0
    %1274 = vmatpush1.msra.mxu0 0.0
    %1275 = vmatprep.subr.mxu0 0.0
    %1276 = vmatpush1.msra.mxu0 0.0
    %1277 = vmatprep.subr.mxu0 0.0
    %1278 = vmatpush1.msra.mxu0 %v83
    %1279 = vmatprep.subr.mxu0 0.0
    %1280 = vmatpush1.msra.mxu0 %v82
    %1281 = vmatprep.subr.mxu0 0.0
    %1282 = vmatpush1.msra.mxu0 %v81
    %1283 = vmatprep.subr.mxu0 0.0
    %1284 = vmatpush1.msra.mxu0 %v80
    %1285 = vmatprep.subr.mxu0 0.0
    %1286 = vmatpush2.msra.mxu0 0.0
    %1287 = vmatprep.subr.mxu0 0.0
    %1288 = vmatpush2.msra.mxu0 0.0
    %1289 = vmatprep.subr.mxu0 0.0
    %1290 = vmatpush2.msra.mxu0 0.0
    %1291 = vmatprep.subr.mxu0 0.0
    %1292 = vmatpush2.msra.mxu0 0.0
    %1293 = vmatprep.subr.mxu0 0.0
    %1294 = vmatpush2.msra.mxu0 0.0
    %1295 = vmatprep.subr.mxu0 0.0
    %1296 = vmatpush2.msra.mxu0 0.0
    %1297 = vmatprep.subr.mxu0 0.0
    %1298 = vmatpush2.msra.mxu0 0.0
    %1299 = vmatprep.subr.mxu0 0.0
    %1300 = vmatpush2.msra.mxu0 0.0
    %1301 = vmatprep.subr.mxu0 0.0
    %1302 = vmatpush2.msra.mxu0 0.0
    %1303 = vmatprep.subr.mxu0 0.0
    %1304 = vmatpush2.msra.mxu0 0.0
    %1305 = vmatprep.subr.mxu0 0.0
    %1306 = vmatpush2.msra.mxu0 0.0
    %1307 = vmatprep.subr.mxu0 0.0
    %1308 = vmatpush2.msra.mxu0 0.0
    %1309 = vmatprep.subr.mxu0 0.0
    %1310 = vmatpush2.msra.mxu0 0.0
    %1311 = vmatprep.subr.mxu0 0.0
    %1312 = vmatpush2.msra.mxu0 0.0
    %1313 = vmatprep.subr.mxu0 0.0
    %1314 = vmatpush2.msra.mxu0 0.0
    %1315 = vmatprep.subr.mxu0 0.0
    %1316 = vmatpush2.msra.mxu0 0.0
    %1317 = vmatprep.mubr.f32.mxu0 0.0
    %1318 = vmatmul.mubr.f32.gmra.mxu0 %v1251
    %v1319 = vpop.f32.mrf.mxu0
    %v1320 = vadd.f32 %v1248, %v1319
    %v1321 = vpop.f32.mrf.mxu0
    %1322 = vdwg.mxu0
    %v1324 = vsel %vm116, %v1219, 0
    %1326 = vmatprep.subr.mxu0 0.0
    %1327 = vmatpush1.msra.mxu0 0.0
    %1328 = vmatprep.subr.mxu0 0.0
    %1329 = vmatpush1.msra.mxu0 0.0
    %1330 = vmatprep.subr.mxu0 0.0
    %1331 = vmatpush1.msra.mxu0 0.0
    %1332 = vmatprep.subr.mxu0 0.0
    %1333 = vmatpush1.msra.mxu0 0.0
    %1334 = vmatprep.subr.mxu0 0.0
    %1335 = vmatpush1.msra.mxu0 0.0
    %1336 = vmatprep.subr.mxu0 0.0
    %1337 = vmatpush1.msra.mxu0 0.0
    %1338 = vmatprep.subr.mxu0 0.0
    %1339 = vmatpush1.msra.mxu0 0.0
    %1340 = vmatprep.subr.mxu0 0.0
    %1341 = vmatpush1.msra.mxu0 0.0
    %1342 = vmatprep.subr.mxu0 0.0
    %1343 = vmatpush1.msra.mxu0 0.0
    %1344 = vmatprep.subr.mxu0 0.0
    %1345 = vmatpush1.msra.mxu0 0.0
    %1346 = vmatprep.subr.mxu0 0.0
    %1347 = vmatpush1.msra.mxu0 0.0
    %1348 = vmatprep.subr.mxu0 0.0
    %1349 = vmatpush1.msra.mxu0 0.0
    %1350 = vmatprep.subr.mxu0 0.0
    %1351 = vmatpush1.msra.mxu0 %v79
    %1352 = vmatprep.subr.mxu0 0.0
    %1353 = vmatpush1.msra.mxu0 %v78
    %1354 = vmatprep.subr.mxu0 0.0
    %1355 = vmatpush1.msra.mxu0 %v77
    %1356 = vmatprep.subr.mxu0 0.0
    %1357 = vmatpush1.msra.mxu0 %v76
    %1358 = vmatprep.subr.mxu0 0.0
    %1359 = vmatpush2.msra.mxu0 0.0
    %1360 = vmatprep.subr.mxu0 0.0
    %1361 = vmatpush2.msra.mxu0 0.0
    %1362 = vmatprep.subr.mxu0 0.0
    %1363 = vmatpush2.msra.mxu0 0.0
    %1364 = vmatprep.subr.mxu0 0.0
    %1365 = vmatpush2.msra.mxu0 0.0
    %1366 = vmatprep.subr.mxu0 0.0
    %1367 = vmatpush2.msra.mxu0 0.0
    %1368 = vmatprep.subr.mxu0 0.0
    %1369 = vmatpush2.msra.mxu0 0.0
    %1370 = vmatprep.subr.mxu0 0.0
    %1371 = vmatpush2.msra.mxu0 0.0
    %1372 = vmatprep.subr.mxu0 0.0
    %1373 = vmatpush2.msra.mxu0 0.0
    %1374 = vmatprep.subr.mxu0 0.0
    %1375 = vmatpush2.msra.mxu0 0.0
    %1376 = vmatprep.subr.mxu0 0.0
    %1377 = vmatpush2.msra.mxu0 0.0
    %1378 = vmatprep.subr.mxu0 0.0
    %1379 = vmatpush2.msra.mxu0 0.0
    %1380 = vmatprep.subr.mxu0 0.0
    %1381 = vmatpush2.msra.mxu0 0.0
    %1382 = vmatprep.subr.mxu0 0.0
    %1383 = vmatpush2.msra.mxu0 0.0
    %1384 = vmatprep.subr.mxu0 0.0
    %1385 = vmatpush2.msra.mxu0 0.0
    %1386 = vmatprep.subr.mxu0 0.0
    %1387 = vmatpush2.msra.mxu0 0.0
    %1388 = vmatprep.subr.mxu0 0.0
    %1389 = vmatpush2.msra.mxu0 0.0
    %1390 = vmatprep.mubr.f32.mxu0 0.0
    %1391 = vmatmul.mubr.f32.gmra.mxu0 %v1324
    %v1392 = vpop.f32.mrf.mxu0
    %v1393 = vadd.f32 0.0, %v1392
    %v1394 = vpop.f32.mrf.mxu0
    %1395 = vdwg.mxu0
    %s1396 = scalar_lea.vmem [#allocation5], 12
    %v1397 = vld [vmem:[%s1396] sm:$0x3]
    %v1398 = vadd.f32 %v1397, %v1393
    %v1399 = vadd.f32 %v1398, %v1320
    %v1400 = vsub.f32 %v1399, %v1215
    %v1401 = vmul.f32 %v271, %v1400
    %v1402 = vadd.f32 %v1401, %v1215
    %v1403 = vtanh.pop %v1402
    %v1404 = vsub.f32 %v1403, %v1219
    %v1405 = vmul.f32 %v281, %v1404
    %v1406 = vadd.f32 %v1405, %v1219
    %1407 = vst.msk [vmem:[%s1237] sm:$0x3] %vm285, %v1406
    %s1408 = scalar_lea.vmem [#allocation11], 12
    %1409 = vst.msk [vmem:[%s1408] sm:$0x3] %vm285, %v1406
    %s1410 = sadd.s32 %s89, 7
    %p1411 = scmp.lt.s32.totalorder %s1410, 0
    %s1412 = ssub.s32 0, %s1410
    %s1413 = scalar_select %p1411, %s1412, %s1410
    %s1414 = sand.u32 %s1413, 3
    %s1415 = ssub.s32 0, %s1414
    %s1416 = scalar_select %p1411, %s1415, %s1414
    %p1417 = scmp.ne.s32.totalorder %s1416, 0
    %p1418 = scmp.lt.s32.totalorder %s1416, 0
    %p1419 = pnand %p1418, %p1417
    %p1420 = pneg %p1419
    %s1421 = sadd.s32 %s1416, 4
    %s1422 = scalar_select %p1420, %s1421, %s1416
    %s1423 = smul.u32 %s1422, 2
    %s1424 = scalar_lea.vmem [#allocation4], %s1423
    %v1425 = vld [vmem:[%s1424] sm:$0x3]
    %p1426 = scmp.ge.s32.totalorder %s1410, 4
    %s1427 = scalar_select %p1426, 1, 0
    %v1428 = vstv %s1427
    %vm1429 = vcmp.eq.s32.totalorder %v1428, 1
    %v1430 = vsel %vm1429, %v84, 0.0
    %v1432 = vlaneseq
    %v1433 = vshrl.u32 %v1432, 7
    %v1434 = vsub.s32 0, %v1433
    %v1435 = vrot.slane %v1430, %v1434
    %v1438 = vsel %vm116, %v1425, 0
    %1440 = vmatprep.subr.mxu0 0.0
    %1441 = vmatpush1.msra.mxu0 0.0
    %1442 = vmatprep.subr.mxu0 0.0
    %1443 = vmatpush1.msra.mxu0 0.0
    %1444 = vmatprep.subr.mxu0 0.0
    %1445 = vmatpush1.msra.mxu0 0.0
    %1446 = vmatprep.subr.mxu0 0.0
    %1447 = vmatpush1.msra.mxu0 0.0
    %1448 = vmatprep.subr.mxu0 0.0
    %1449 = vmatpush1.msra.mxu0 0.0
    %1450 = vmatprep.subr.mxu0 0.0
    %1451 = vmatpush1.msra.mxu0 0.0
    %1452 = vmatprep.subr.mxu0 0.0
    %1453 = vmatpush1.msra.mxu0 0.0
    %1454 = vmatprep.subr.mxu0 0.0
    %1455 = vmatpush1.msra.mxu0 0.0
    %1456 = vmatprep.subr.mxu0 0.0
    %1457 = vmatpush1.msra.mxu0 0.0
    %1458 = vmatprep.subr.mxu0 0.0
    %1459 = vmatpush1.msra.mxu0 0.0
    %1460 = vmatprep.subr.mxu0 0.0
    %1461 = vmatpush1.msra.mxu0 0.0
    %1462 = vmatprep.subr.mxu0 0.0
    %1463 = vmatpush1.msra.mxu0 0.0
    %1464 = vmatprep.subr.mxu0 0.0
    %1465 = vmatpush1.msra.mxu0 %v83
    %1466 = vmatprep.subr.mxu0 0.0
    %1467 = vmatpush1.msra.mxu0 %v82
    %1468 = vmatprep.subr.mxu0 0.0
    %1469 = vmatpush1.msra.mxu0 %v81
    %1470 = vmatprep.subr.mxu0 0.0
    %1471 = vmatpush1.msra.mxu0 %v80
    %1472 = vmatprep.subr.mxu0 0.0
    %1473 = vmatpush2.msra.mxu0 0.0
    %1474 = vmatprep.subr.mxu0 0.0
    %1475 = vmatpush2.msra.mxu0 0.0
    %1476 = vmatprep.subr.mxu0 0.0
    %1477 = vmatpush2.msra.mxu0 0.0
    %1478 = vmatprep.subr.mxu0 0.0
    %1479 = vmatpush2.msra.mxu0 0.0
    %1480 = vmatprep.subr.mxu0 0.0
    %1481 = vmatpush2.msra.mxu0 0.0
    %1482 = vmatprep.subr.mxu0 0.0
    %1483 = vmatpush2.msra.mxu0 0.0
    %1484 = vmatprep.subr.mxu0 0.0
    %1485 = vmatpush2.msra.mxu0 0.0
    %1486 = vmatprep.subr.mxu0 0.0
    %1487 = vmatpush2.msra.mxu0 0.0
    %1488 = vmatprep.subr.mxu0 0.0
    %1489 = vmatpush2.msra.mxu0 0.0
    %1490 = vmatprep.subr.mxu0 0.0
    %1491 = vmatpush2.msra.mxu0 0.0
    %1492 = vmatprep.subr.mxu0 0.0
    %1493 = vmatpush2.msra.mxu0 0.0
    %1494 = vmatprep.subr.mxu0 0.0
    %1495 = vmatpush2.msra.mxu0 0.0
    %1496 = vmatprep.subr.mxu0 0.0
    %1497 = vmatpush2.msra.mxu0 0.0
    %1498 = vmatprep.subr.mxu0 0.0
    %1499 = vmatpush2.msra.mxu0 0.0
    %1500 = vmatprep.subr.mxu0 0.0
    %1501 = vmatpush2.msra.mxu0 0.0
    %1502 = vmatprep.subr.mxu0 0.0
    %1503 = vmatpush2.msra.mxu0 0.0
    %1504 = vmatprep.mubr.f32.mxu0 0.0
    %1505 = vmatmul.mubr.f32.gmra.mxu0 %v1438
    %v1506 = vpop.f32.mrf.mxu0
    %v1507 = vadd.f32 %v1435, %v1506
    %v1508 = vpop.f32.mrf.mxu0
    %1509 = vdwg.mxu0
    %v1511 = vsel %vm116, %v1406, 0
    %1513 = vmatprep.subr.mxu0 0.0
    %1514 = vmatpush1.msra.mxu0 0.0
    %1515 = vmatprep.subr.mxu0 0.0
    %1516 = vmatpush1.msra.mxu0 0.0
    %1517 = vmatprep.subr.mxu0 0.0
    %1518 = vmatpush1.msra.mxu0 0.0
    %1519 = vmatprep.subr.mxu0 0.0
    %1520 = vmatpush1.msra.mxu0 0.0
    %1521 = vmatprep.subr.mxu0 0.0
    %1522 = vmatpush1.msra.mxu0 0.0
    %1523 = vmatprep.subr.mxu0 0.0
    %1524 = vmatpush1.msra.mxu0 0.0
    %1525 = vmatprep.subr.mxu0 0.0
    %1526 = vmatpush1.msra.mxu0 0.0
    %1527 = vmatprep.subr.mxu0 0.0
    %1528 = vmatpush1.msra.mxu0 0.0
    %1529 = vmatprep.subr.mxu0 0.0
    %1530 = vmatpush1.msra.mxu0 0.0
    %1531 = vmatprep.subr.mxu0 0.0
    %1532 = vmatpush1.msra.mxu0 0.0
    %1533 = vmatprep.subr.mxu0 0.0
    %1534 = vmatpush1.msra.mxu0 0.0
    %1535 = vmatprep.subr.mxu0 0.0
    %1536 = vmatpush1.msra.mxu0 0.0
    %1537 = vmatprep.subr.mxu0 0.0
    %1538 = vmatpush1.msra.mxu0 %v79
    %1539 = vmatprep.subr.mxu0 0.0
    %1540 = vmatpush1.msra.mxu0 %v78
    %1541 = vmatprep.subr.mxu0 0.0
    %1542 = vmatpush1.msra.mxu0 %v77
    %1543 = vmatprep.subr.mxu0 0.0
    %1544 = vmatpush1.msra.mxu0 %v76
    %1545 = vmatprep.subr.mxu0 0.0
    %1546 = vmatpush2.msra.mxu0 0.0
    %1547 = vmatprep.subr.mxu0 0.0
    %1548 = vmatpush2.msra.mxu0 0.0
    %1549 = vmatprep.subr.mxu0 0.0
    %1550 = vmatpush2.msra.mxu0 0.0
    %1551 = vmatprep.subr.mxu0 0.0
    %1552 = vmatpush2.msra.mxu0 0.0
    %1553 = vmatprep.subr.mxu0 0.0
    %1554 = vmatpush2.msra.mxu0 0.0
    %1555 = vmatprep.subr.mxu0 0.0
    %1556 = vmatpush2.msra.mxu0 0.0
    %1557 = vmatprep.subr.mxu0 0.0
    %1558 = vmatpush2.msra.mxu0 0.0
    %1559 = vmatprep.subr.mxu0 0.0
    %1560 = vmatpush2.msra.mxu0 0.0
    %1561 = vmatprep.subr.mxu0 0.0
    %1562 = vmatpush2.msra.mxu0 0.0
    %1563 = vmatprep.subr.mxu0 0.0
    %1564 = vmatpush2.msra.mxu0 0.0
    %1565 = vmatprep.subr.mxu0 0.0
    %1566 = vmatpush2.msra.mxu0 0.0
    %1567 = vmatprep.subr.mxu0 0.0
    %1568 = vmatpush2.msra.mxu0 0.0
    %1569 = vmatprep.subr.mxu0 0.0
    %1570 = vmatpush2.msra.mxu0 0.0
    %1571 = vmatprep.subr.mxu0 0.0
    %1572 = vmatpush2.msra.mxu0 0.0
    %1573 = vmatprep.subr.mxu0 0.0
    %1574 = vmatpush2.msra.mxu0 0.0
    %1575 = vmatprep.subr.mxu0 0.0
    %1576 = vmatpush2.msra.mxu0 0.0
    %1577 = vmatprep.mubr.f32.mxu0 0.0
    %1578 = vmatmul.mubr.f32.gmra.mxu0 %v1511
    %v1579 = vpop.f32.mrf.mxu0
    %v1580 = vadd.f32 0.0, %v1579
    %v1581 = vpop.f32.mrf.mxu0
    %1582 = vdwg.mxu0
    %s1583 = scalar_lea.vmem [#allocation5], 14
    %v1584 = vld [vmem:[%s1583] sm:$0x3]
    %v1585 = vadd.f32 %v1584, %v1580
    %v1586 = vadd.f32 %v1585, %v1507
    %v1587 = vsub.f32 %v1586, %v1402
    %v1588 = vmul.f32 %v271, %v1587
    %v1589 = vadd.f32 %v1588, %v1402
    %v1590 = vtanh.pop %v1589
    %v1591 = vsub.f32 %v1590, %v1406
    %v1592 = vmul.f32 %v281, %v1591
    %v1593 = vadd.f32 %v1592, %v1406
    %1594 = vst.msk [vmem:[%s1424] sm:$0x3] %vm285, %v1593
    %s1595 = scalar_lea.vmem [#allocation11], 14
    %1596 = vst.msk [vmem:[%s1595] sm:$0x3] %vm285, %v1593
    %1597 = vst.msk [vmem:[#allocation2] sm:$0x3] %vm285, %v1593
    %1598 = vst.msk [vmem:[#allocation3] sm:$0x3] %vm285, %v1589
    // Predicated region
    $region42: #{tpu_custom_call.1} parent=1 // pred_check
      _
    $region43: #{tpu_custom_call.1} parent=1 // pred_check_branch
      %1600 = sbr.rel (0) target = $region45
    $region44: #{tpu_custom_call.1} parent=1 // pred_region
      %s1602 = ssub.s32 256, 256
      %1603 = vsyncadd [#allocation7], %s1602
      %s1604 = sshll.u32 [#allocation11], 4
      %s1605 = int_to_ptr.vmem [resolvable:$true] %s1604
      %1610 = dma.vmem_to_hbm [thread:$0]  %s1605, 256, %s6, [#allocation7], 32, 32, 2
    $region45: #{tpu_custom_call.1} parent=1 // pred_fallthru
      _
    // Predicated region
    $region46: #{tpu_custom_call.1} parent=1 // pred_check
      _
    $region47: #{tpu_custom_call.1} parent=1 // pred_check_branch
      %1612 = sbr.rel (0) target = $region49
    $region48: #{tpu_custom_call.1} parent=1 // pred_region
      %1613 = dma.done [#allocation7], 256
    $region49: #{tpu_custom_call.1} parent=1 // pred_fallthru
      _
    %1614 = vsyncpa [#allocation6], 1
    %1615 = vsyncpa [#allocation9], 1
    %1616 = vsyncpa [#allocation7], 1

</llo_original>
